<compile_context>
chip_gen: v7x
topology: tpu7x:2x2x1
jax: 0.10.0
libtpu: 0.0.40
codegen_flags: <defaults>
</compile_context>

<pallas_src>
import jax
import jax.numpy as jnp
from jax.experimental import pallas as pl
from jax.experimental.pallas import tpu as pltpu

FC_DIM = 128


def _cnn_kernel(p_ref, w1_ref, b1_ref, w2_ref, b2_ref, o_ref, acc_ref):
    """One (batch-block i, HW-chunk j) grid step.

    p_ref  : (tb, K, th)   bf16 im2col patches, lane-dense along the HW chunk
    w1_ref : (tb, C1, K)   bf16 conv weights (pre-broadcast over batch block)
    b1_ref : (C1, 1)       f32 conv bias
    w2_ref : (C1, FC_DIM)  f32 FC weights (1/(H*W) pool scale folded in)
    b2_ref : (1, FC_DIM)   f32 FC bias
    o_ref  : (tb, FC_DIM)  f32 output slab
    acc_ref: (tb, C1)      f32 pooled-sum accumulator (scratch)
    """
    j = pl.program_id(1)

    @pl.when(j == 0)
    def _():
        acc_ref[...] = jnp.zeros_like(acc_ref)

    # Batched MXU GEMM: bf16 operands, f32 accumulation.  The long HW chunk
    # sits in lanes, so the hidden intermediate is lane-dense.
    h = jnp.einsum("bck,bkt->bct", w1_ref[...], p_ref[...],
                   preferred_element_type=jnp.float32)      # (tb, C1, th)

    # Bias + ReLU in f32 (VPU), then the partial global-average-pool sum for
    # this HW chunk (lane-axis reduce).  Exact: pooling is a sum of the
    # per-position ReLU terms, scale folded into w2.
    h = jnp.maximum(h + b1_ref[...][None, :, :], 0.0)
    acc_ref[...] += jnp.sum(h, axis=2)                      # (tb, C1)

    @pl.when(j == pl.num_programs(1) - 1)
    def _():
        # Tiny FC head (f32), lane-dense (tb, 128) output write.
        out = jnp.dot(acc_ref[...], w2_ref[...],
                      preferred_element_type=jnp.float32) + b2_ref[...]
        o_ref[...] = out.astype(o_ref.dtype)                # (tb, FC_DIM)


def _round_up(v, m):
    return (v + m - 1) // m * m


def pretrained_cnn_forward(x_nchw, params, *, tb=None, th=None):
    """Forward pass: (B, C, H, W) float32 -> (B, FC_DIM) float32."""
    w1, b1, w2, b2 = params["w1"], params["b1"], params["w2"], params["b2"]
    B, C_in, H, W = x_nchw.shape
    C1 = w1.shape[-1]
    HW = H * W
    K = 9 * C_in

    # ---- tile sizes --------------------------------------------------------
    if tb is None:
        # >=2 batch blocks once B spans more than one 8-row block, so the
        # "parallel" batch axis shards across the two v7x TensorCores; cap at
        # 128 to bound per-step VMEM on all generations (v5e's 16 MiB scoped
        # default included).
        tb = min(128, max(8, _round_up(-(-B // 2), 8)))
    Bp = _round_up(B, tb)

    if th is None:
        # HW reduction chunk: lane-dense (multiple of 128) and >=2 chunks when
        # possible so patch DMA overlaps compute even for a single batch block.
        th = 128 if (HW % 128 == 0 and HW > 128) else HW
    assert HW % th == 0, (HW, th)

    # ---- XLA-side layout prep (bf16 FIRST so pad/concat move half the bytes)
    xb = x_nchw.astype(jnp.bfloat16)                          # (B, C, H, W)
    x_pad = jnp.pad(xb, ((0, 0), (0, 0), (1, 1), (1, 1)))     # spatial pad
    taps = [x_pad[:, :, dy:dy + H, dx:dx + W].reshape(B, C_in, HW)
            for dy in range(3) for dx in range(3)]
    patches = jnp.concatenate(taps, axis=1)                   # (B, K, HW)
    if Bp != B:
        # Padded batch rows are computed and discarded (cheap at these sizes).
        patches = jnp.pad(patches, ((0, Bp - B), (0, 0), (0, 0)))

    # Conv weights flattened to (C1, K) and pre-broadcast over the batch block
    # so the in-kernel batched einsum needs no broadcast; the constant
    # index_map keeps them resident in VMEM across all grid steps.
    w1_t = jnp.transpose(w1.reshape(K, C1)).astype(jnp.bfloat16)   # (C1, K)
    w1_b = jnp.broadcast_to(w1_t[None], (tb, C1, K))               # (tb,C1,K)
    b1_col = b1.reshape(C1, 1).astype(jnp.float32)
    # Fold the 1/(H*W) average-pool scale into the FC weights (pool is linear).
    w2_mat = (w2 * (1.0 / float(HW))).astype(jnp.float32)          # (C1, FC)
    b2_row = b2.reshape(1, FC_DIM).astype(jnp.float32)

    # ---- VMEM budget (per generation via reported capacity) ----------------
    K_sub = _round_up(K, 16)            # bf16 sublane tile
    th_ln = _round_up(th, 128)
    vmem_need = (
        2 * tb * K_sub * th_ln * 2                        # patches x2 buffers
        + 2 * tb * _round_up(C1, 16) * _round_up(K, 128) * 2   # conv weights
        + tb * _round_up(C1, 8) * th_ln * 4               # f32 hidden temp
        + tb * _round_up(C1, 128) * 4                     # pool accumulator
        + 2 * tb * _round_up(FC_DIM, 128) * 4             # output block x2
        + 2 * _round_up(C1, 8) * _round_up(FC_DIM, 128) * 4    # FC weights
        + 4 * _round_up(C1, 128) * 4                      # biases (generous)
    )
    try:
        vmem_cap = int(getattr(pltpu.get_tpu_info(), "vmem_capacity_bytes",
                               64 * 2 ** 20))
    except Exception:
        vmem_cap = 64 * 2 ** 20          # v7x per-TC physical; conservative
    vmem_limit = int(min(vmem_cap // 2, max(16 * 2 ** 20, 2 * vmem_need)))

    flops = 2 * Bp * HW * K * C1 + 2 * Bp * C1 * FC_DIM
    bytes_accessed = (patches.size * 2 + w1_b.size * 2
                      + (b1_col.size + w2_mat.size + b2_row.size) * 4
                      + Bp * FC_DIM * 4)

    out = pl.pallas_call(
        _cnn_kernel,
        out_shape=jax.ShapeDtypeStruct((Bp, FC_DIM), jnp.float32),
        grid_spec=pltpu.PrefetchScalarGridSpec(
            num_scalar_prefetch=0,
            grid=(Bp // tb, HW // th),
            in_specs=[
                pl.BlockSpec((tb, K, th), lambda i, j: (i, 0, j)),
                pl.BlockSpec((tb, C1, K), lambda i, j: (0, 0, 0)),
                pl.BlockSpec((C1, 1), lambda i, j: (0, 0)),
                pl.BlockSpec((C1, FC_DIM), lambda i, j: (0, 0)),
                pl.BlockSpec((1, FC_DIM), lambda i, j: (0, 0)),
            ],
            out_specs=pl.BlockSpec((tb, FC_DIM), lambda i, j: (i, 0)),
            scratch_shapes=[pltpu.VMEM((tb, C1), jnp.float32)],
        ),
        compiler_params=pltpu.CompilerParams(
            dimension_semantics=("parallel", "arbitrary"),
            vmem_limit_bytes=vmem_limit),
        cost_estimate=pl.CostEstimate(
            flops=flops, transcendentals=0, bytes_accessed=bytes_accessed),
    )(patches, w1_b, b1_col, w2_mat, b2_row)

    return out[:B]  # (B, FC_DIM)


def _reference_forward(x_nchw, params):
    """Pure-JAX f32 reference (same synthetic backbone)."""
    w1, b1, w2, b2 = params["w1"], params["b1"], params["w2"], params["b2"]
    B, C_in, H, W = x_nchw.shape
    C1 = w1.shape[-1]
    x_nhwc = jnp.transpose(x_nchw, (0, 2, 3, 1))
    x_pad = jnp.pad(x_nhwc, ((0, 0), (1, 1), (1, 1), (0, 0)))
    taps = [x_pad[:, dy:dy + H, dx:dx + W, :]
            for dy in range(3) for dx in range(3)]
    patches = jnp.concatenate(taps, axis=-1).reshape(B, H * W, 9 * C_in)
    hidden = jnp.maximum(
        jnp.einsum("bpk,kc->bpc", patches, w1.reshape(9 * C_in, C1))
        + b1.reshape(1, 1, C1), 0.0)
    pooled = jnp.mean(hidden, axis=1)
    return pooled @ w2 + b2.reshape(1, FC_DIM)


def init_params(key, c_in=4, c1=32):
    """Deterministic synthetic parameters (stand-in for timm weights)."""
    k1, k2 = jax.random.split(key, 2)
    # 3x3 conv: stored as (9, C_in, C1) == flattened (kh, kw, C_in, C1).
    w1 = jax.random.normal(k1, (9, c_in, c1), jnp.float32) * 0.1
    b1 = jnp.zeros((1, c1), jnp.float32)
    # FC head: (C1, FC_DIM).
    w2 = jax.random.normal(k2, (c1, FC_DIM), jnp.float32) * 0.1
    b2 = jnp.zeros((1, FC_DIM), jnp.float32)
    return {"w1": w1, "b1": b1, "w2": w2, "b2": b2}


if __name__ == "__main__":
    key = jax.random.PRNGKey(0)
    k_x, k_p = jax.random.split(key)

    B, C, H, W = 2, 4, 16, 16
    x = jax.random.normal(k_x, (B, C, H, W), jnp.float32)
    params = init_params(k_p, c_in=C, c1=32)

    y = pretrained_cnn_forward(x, params)
    y = jax.block_until_ready(y)

    assert y.shape == (B, FC_DIM), y.shape
    assert y.dtype == jnp.float32

    # Loose tolerance: kernel uses bf16 MXU operands with f32 accumulation.
    y_ref = _reference_forward(x, params)
    assert bool(jnp.allclose(y, y_ref, atol=5e-2, rtol=5e-2)), (
        float(jnp.max(jnp.abs(y - y_ref))))

    print("KERNEL_OK")
</pallas_src>

<mosaic_0001>
module attributes {stable_mosaic.version = 11 : i64} {
  func.func @_cnn_kernel(%arg0: i32, %arg1: i32, %arg2: memref<8x36x128xbf16, #tpu.memory_space<vmem>>, %arg3: memref<8x32x36xbf16, #tpu.memory_space<vmem>>, %arg4: memref<32x1xf32, #tpu.memory_space<vmem>>, %arg5: memref<32x128xf32, #tpu.memory_space<vmem>>, %arg6: memref<1x128xf32, #tpu.memory_space<vmem>>, %arg7: memref<8x128xf32, #tpu.memory_space<vmem>>, %arg8: memref<8x32xf32, #tpu.memory_space<vmem>>) attributes {dimension_semantics = [#tpu.dimension_semantics<parallel>, #tpu.dimension_semantics<arbitrary>], iteration_bounds = array<i64: 1, 2>, scalar_prefetch = 0 : i64, scratch_operands = 1 : i64, tpu.core_type = #tpu.core_type<tc>, window_params = [{transform_indices = @transform_0, window_bounds = array<i64: 8, 36, 128>}, {pipeline_mode = #tpu.pipeline_mode<synchronous>, transform_indices = @transform_1, window_bounds = array<i64: 8, 32, 36>}, {pipeline_mode = #tpu.pipeline_mode<synchronous>, transform_indices = @transform_2, window_bounds = array<i64: 32, 1>}, {pipeline_mode = #tpu.pipeline_mode<synchronous>, transform_indices = @transform_3, window_bounds = array<i64: 32, 128>}, {pipeline_mode = #tpu.pipeline_mode<synchronous>, transform_indices = @transform_4, window_bounds = array<i64: 1, 128>}, {transform_indices = @transform_5, window_bounds = array<i64: 8, 128>}]} {
    %c0_i32 = arith.constant 0 : i32
    %0 = arith.cmpi eq, %arg1, %c0_i32 : i32
    %1 = arith.extui %0 : i1 to i32
    %c0_i32_0 = arith.constant 0 : i32
    %2 = arith.cmpi ne, %1, %c0_i32_0 : i32
    scf.if %2 {
      %cst_15 = arith.constant 0.000000e+00 : f32
      %19 = vector.broadcast %cst_15 : f32 to vector<8x32xf32>
      %c0_16 = arith.constant 0 : index
      %c0_17 = arith.constant 0 : index
      %20 = vector.load %arg8[%c0_16, %c0_17] : memref<8x32xf32, #tpu.memory_space<vmem>>, vector<8x32xf32>
      tpu.vector_store %arg8[%c0_16, %c0_17], %19 {strides = array<i32>} : memref<8x32xf32, #tpu.memory_space<vmem>>, vector<8x32xf32>,
    } else {
    }
    %c0 = arith.constant 0 : index
    %c0_1 = arith.constant 0 : index
    %c0_2 = arith.constant 0 : index
    %3 = vector.load %arg3[%c0, %c0_1, %c0_2] : memref<8x32x36xbf16, #tpu.memory_space<vmem>>, vector<8x32x36xbf16>
    %c0_3 = arith.constant 0 : index
    %c0_4 = arith.constant 0 : index
    %c0_5 = arith.constant 0 : index
    %4 = vector.load %arg2[%c0_3, %c0_4, %c0_5] : memref<8x36x128xbf16, #tpu.memory_space<vmem>>, vector<8x36x128xbf16>
    "tpu.trace_start"() <{level = 10 : i32, message = "bck,bkt->bct"}> : () -> ()
    %cst = arith.constant dense<0.000000e+00> : vector<8x32x128xf32>
    %5 = tpu.matmul %3, %4, %cst {dimension_numbers = #tpu.dot_dimension_numbers<[2], [1], [1], [2], [0, 0, 0, 1, 1, 2], [0], [0]>} : vector<8x32x36xbf16>, vector<8x36x128xbf16>, vector<8x32x128xf32> -> vector<8x32x128xf32>
    "tpu.trace_stop"() : () -> ()
    %c0_6 = arith.constant 0 : index
    %c0_7 = arith.constant 0 : index
    %6 = vector.load %arg4[%c0_6, %c0_7] : memref<32x1xf32, #tpu.memory_space<vmem>>, vector<32x1xf32>
    %7 = vector.shape_cast %6 : vector<32x1xf32> to vector<1x32x1xf32>
    %8 = vector.broadcast %7 : vector<1x32x1xf32> to vector<8x32x128xf32>
    %9 = arith.addf %5, %8 : vector<8x32x128xf32>
    %cst_8 = arith.constant 0.000000e+00 : f32
    %10 = vector.broadcast %cst_8 : f32 to vector<8x32x128xf32>
    %11 = arith.maximumf %9, %10 : vector<8x32x128xf32>
    %c0_9 = arith.constant 0 : index
    %c0_10 = arith.constant 0 : index
    %12 = vector.load %arg8[%c0_9, %c0_10] : memref<8x32xf32, #tpu.memory_space<vmem>>, vector<8x32xf32>
    %cst_11 = arith.constant dense<0.000000e+00> : vector<8x32xf32>
    %13 = vector.multi_reduction <add>, %11, %cst_11 [2] : vector<8x32x128xf32> to vector<8x32xf32>
    %14 = arith.addf %12, %13 : vector<8x32xf32>
    %c0_12 = arith.constant 0 : index
    %c0_13 = arith.constant 0 : index
    %15 = vector.load %arg8[%c0_12, %c0_13] : memref<8x32xf32, #tpu.memory_space<vmem>>, vector<8x32xf32>
    tpu.vector_store %arg8[%c0_12, %c0_13], %14 {strides = array<i32>} : memref<8x32xf32, #tpu.memory_space<vmem>>, vector<8x32xf32>,
    %c1_i32 = arith.constant 1 : i32
    %16 = arith.cmpi eq, %arg1, %c1_i32 : i32
    %17 = arith.extui %16 : i1 to i32
    %c0_i32_14 = arith.constant 0 : i32
    %18 = arith.cmpi ne, %17, %c0_i32_14 : i32
    scf.if %18 {
      %c0_15 = arith.constant 0 : index
      %c0_16 = arith.constant 0 : index
      %19 = vector.load %arg8[%c0_15, %c0_16] : memref<8x32xf32, #tpu.memory_space<vmem>>, vector<8x32xf32>
      %c0_17 = arith.constant 0 : index
      %c0_18 = arith.constant 0 : index
      %20 = vector.load %arg5[%c0_17, %c0_18] : memref<32x128xf32, #tpu.memory_space<vmem>>, vector<32x128xf32>
      %cst_19 = arith.constant dense<0.000000e+00> : vector<8x128xf32>
      %21 = tpu.matmul %19, %20, %cst_19 {dimension_numbers = #tpu.dot_dimension_numbers<[1], [0], [0], [1], [0, 0, 1, 1], [], []>} : vector<8x32xf32>, vector<32x128xf32>, vector<8x128xf32> -> vector<8x128xf32>
      %c0_20 = arith.constant 0 : index
      %c0_21 = arith.constant 0 : index
      %22 = vector.load %arg6[%c0_20, %c0_21] : memref<1x128xf32, #tpu.memory_space<vmem>>, vector<1x128xf32>
      %23 = vector.broadcast %22 : vector<1x128xf32> to vector<8x128xf32>
      %24 = arith.addf %21, %23 : vector<8x128xf32>
      %c0_22 = arith.constant 0 : index
      %c0_23 = arith.constant 0 : index
      %25 = vector.load %arg7[%c0_22, %c0_23] : memref<8x128xf32, #tpu.memory_space<vmem>>, vector<8x128xf32>
      tpu.vector_store %arg7[%c0_22, %c0_23], %24 {strides = array<i32>} : memref<8x128xf32, #tpu.memory_space<vmem>>, vector<8x128xf32>,
    } else {
    }
    return
  }
  func.func @transform_0(%arg0: i32, %arg1: i32) -> (i32, i32, i32) {
    %c0_i32 = arith.constant 0 : i32
    %c0_i32_0 = arith.constant 0 : i32
    return %arg0, %c0_i32, %arg1 : i32, i32, i32
  }
  func.func @transform_1(%arg0: i32, %arg1: i32) -> (i32, i32, i32) {
    %c0_i32 = arith.constant 0 : i32
    %c0_i32_0 = arith.constant 0 : i32
    %c0_i32_1 = arith.constant 0 : i32
    %c0_i32_2 = arith.constant 0 : i32
    return %c0_i32, %c0_i32_0, %c0_i32_1 : i32, i32, i32
  }
  func.func @transform_2(%arg0: i32, %arg1: i32) -> (i32, i32) {
    %c0_i32 = arith.constant 0 : i32
    %c0_i32_0 = arith.constant 0 : i32
    %c0_i32_1 = arith.constant 0 : i32
    return %c0_i32, %c0_i32_0 : i32, i32
  }
  func.func @transform_3(%arg0: i32, %arg1: i32) -> (i32, i32) {
    %c0_i32 = arith.constant 0 : i32
    %c0_i32_0 = arith.constant 0 : i32
    %c0_i32_1 = arith.constant 0 : i32
    return %c0_i32, %c0_i32_0 : i32, i32
  }
  func.func @transform_4(%arg0: i32, %arg1: i32) -> (i32, i32) {
    %c0_i32 = arith.constant 0 : i32
    %c0_i32_0 = arith.constant 0 : i32
    %c0_i32_1 = arith.constant 0 : i32
    return %c0_i32, %c0_i32_0 : i32, i32
  }
  func.func @transform_5(%arg0: i32, %arg1: i32) -> (i32, i32) {
    %c0_i32 = arith.constant 0 : i32
    %c0_i32_0 = arith.constant 0 : i32
    return %arg0, %c0_i32 : i32, i32
  }
}

</mosaic_0001>

<llo_original>
// kernel: tpu_custom_call.1
$region0: #{tpu_custom_call.1}
  #allocation0 [shape = 'u32[]', space=smem, size = 0x4, offset = 0x4, fixed_abs, tag = 'smem constant byte address 0x4 - core index']
  #allocation1 [shape = 'u32[144,128]{1,0:T(1,128)}', space=vmem, size = 0x12000, scoped, tag = 'internal scratch']
  #allocation2 [shape = 'f32[8,32]{1,0:T(8,128)}', space=vmem, size = 0x1000, scoped, tag = 'scratch operand']
  %s0 = inlined_call_operand.vmem [shape: bf16[8,36,256], index: 0, kind: input, shape index: {}]
  %s1 = inlined_call_operand.vmem [shape: bf16[8,32,36], index: 1, kind: input, shape index: {}]
  %s2 = inlined_call_operand.vmem [shape: f32[32,1], index: 2, kind: input, shape index: {}]
  %s3 = inlined_call_operand.vmem [shape: f32[32,128], index: 3, kind: input, shape index: {}]
  %s4 = inlined_call_operand.vmem [shape: f32[1,128], index: 4, kind: input, shape index: {}]
  %s5 = inlined_call_operand.hbm [shape: f32[8,128], index: 5, kind: output, shape index: {}]
  %s6 = sld [smem:[#allocation0]]
  $region102: #{tpu_custom_call.1} parent=0
    _
  %s8 = ssub.s32 1, %s6
  %s9 = scalar_select 0, %s8, %s6
  $region1: #{tpu_custom_call.1} parent=0
    #allocation3 [shape = 'u8[163840]{0}', space=vmem, size = 0x28000, scoped, tag = 'input window, operand 0']
    #allocation4 [shape = 'u8[4096]{0}', space=vmem, size = 0x1000, scoped, tag = 'output window, operand 0, single buffered']
    #allocation5 [shape = 's32[2]{0}', space=sflag, size = 0x8, scoped, tag = 'scoped memory for tpu_custom_call.1']
    %10 = vsyncpa [#allocation5], 0
    loop: start=0, step=1, limit=4
    $region2: #{tpu_custom_call.1} parent=1 // loop_pre_header
      _
    $region3: #{tpu_custom_call.1} parent=1 // loop_header
      %s12 = sphi 0, %s16
      %p13 = scmp.ge.s32.totalorder %s12, 4
      %s19 = sphi 0, %s31
      %s20 = sphi 0, %s27
      %s21 = sphi 0, %s19
      %s22 = sphi 0, %s20
      %s23 = sphi 0, %s21
      %s24 = sphi 0, %s22
      %s36 = sphi 0, %s38
      %s39 = sphi 0, %s36
      %s40 = sphi 0, %s39
      %s56 = sphi 0, %s40
      %s60 = sphi 0, %s60
      %s62 = sphi 0, %s60
      %s63 = sphi 0, %s62
      %s77 = sphi 0, %s63
      %s81 = sphi 0, %s81
      %s83 = sphi 0, %s81
      %s84 = sphi 0, %s83
      %s98 = sphi 0, %s84
      %s102 = sphi 0, %s102
      %s104 = sphi 0, %s102
      %s105 = sphi 0, %s104
      %s119 = sphi 0, %s105
      %s123 = sphi 0, %s123
      %s125 = sphi 0, %s123
      %s126 = sphi 0, %s125
      %s140 = sphi 0, %s126
      %s146 = sphi 0, %s148
      %s149 = sphi 0, %s146
      %s150 = sphi 0, %s149
      %s166 = sphi 0, %s150
    $region4: #{tpu_custom_call.1} parent=1 // loop_header_branch
      %15 = sbr.rel (%p13) target = $region8
    $region5: #{tpu_custom_call.1} parent=1 // loop_body
      %s17 = ssub.s32 %s12, 1
      %s18 = ssub.s32 %s12, 2
      %s25 = sadd.s32 1, %s20
      %p26 = scmp.ge.s32.totalorder %s25, 2
      %s27 = scalar_select %p26, 0, %s25
      %s28 = sadd.s32 1, %s19
      %s29 = scalar_select %p26, %s28, %s19
      %p30 = scmp.ge.s32.totalorder %s29, 1
      %s31 = scalar_select %p30, 0, %s29
      %s32 = ssub.s32 %s19, %s31
      %s33 = ssub.s32 %s20, %s27
      %s34 = sor.u32 %s32, %s33
      %p35 = scmp.eq.s32.totalorder %s34, 0
      %s37 = sadd.s32 %s36, 1
      %s38 = scalar_select %p35, %s36, %s37
      %p41 = pneg %p35
      %p42 = scmp.eq.s32.totalorder %s12, 1
      %p43 = por %p41, %p42
      %p44 = scmp.ne.s32.totalorder %s36, %s39
      %p45 = scmp.eq.s32.totalorder %s12, 0
      %p46 = por %p44, %p45
      %p47 = scmp.ne.s32.totalorder %s36, %s39
      %p48 = scmp.eq.s32.totalorder %s17, 1
      %p49 = por %p47, %p48
      %p50 = scmp.ne.s32.totalorder %s39, %s40
      %p51 = scmp.eq.s32.totalorder %s17, 0
      %p52 = por %p50, %p51
      %p53 = scmp.ne.s32.totalorder %s39, %s40
      %p54 = scmp.eq.s32.totalorder %s18, 1
      %p55 = por %p53, %p54
      %p57 = scmp.ne.s32.totalorder %s40, %s56
      %p58 = scmp.eq.s32.totalorder %s18, 0
      %p59 = por %p57, %p58
      %s61 = sadd.s32 %s60, 1
      %p64 = scmp.eq.s32.totalorder %s12, 1
      %p65 = scmp.ne.s32.totalorder %s60, %s62
      %p66 = scmp.eq.s32.totalorder %s12, 0
      %p67 = por %p65, %p66
      %p68 = scmp.ne.s32.totalorder %s60, %s62
      %p69 = scmp.eq.s32.totalorder %s17, 1
      %p70 = por %p68, %p69
      %p71 = scmp.ne.s32.totalorder %s62, %s63
      %p72 = scmp.eq.s32.totalorder %s17, 0
      %p73 = por %p71, %p72
      %p74 = scmp.ne.s32.totalorder %s62, %s63
      %p75 = scmp.eq.s32.totalorder %s18, 1
      %p76 = por %p74, %p75
      %p78 = scmp.ne.s32.totalorder %s63, %s77
      %p79 = scmp.eq.s32.totalorder %s18, 0
      %p80 = por %p78, %p79
      %s82 = sadd.s32 %s81, 1
      %p85 = scmp.eq.s32.totalorder %s12, 1
      %p86 = scmp.ne.s32.totalorder %s81, %s83
      %p87 = scmp.eq.s32.totalorder %s12, 0
      %p88 = por %p86, %p87
      %p89 = scmp.ne.s32.totalorder %s81, %s83
      %p90 = scmp.eq.s32.totalorder %s17, 1
      %p91 = por %p89, %p90
      %p92 = scmp.ne.s32.totalorder %s83, %s84
      %p93 = scmp.eq.s32.totalorder %s17, 0
      %p94 = por %p92, %p93
      %p95 = scmp.ne.s32.totalorder %s83, %s84
      %p96 = scmp.eq.s32.totalorder %s18, 1
      %p97 = por %p95, %p96
      %p99 = scmp.ne.s32.totalorder %s84, %s98
      %p100 = scmp.eq.s32.totalorder %s18, 0
      %p101 = por %p99, %p100
      %s103 = sadd.s32 %s102, 1
      %p106 = scmp.eq.s32.totalorder %s12, 1
      %p107 = scmp.ne.s32.totalorder %s102, %s104
      %p108 = scmp.eq.s32.totalorder %s12, 0
      %p109 = por %p107, %p108
      %p110 = scmp.ne.s32.totalorder %s102, %s104
      %p111 = scmp.eq.s32.totalorder %s17, 1
      %p112 = por %p110, %p111
      %p113 = scmp.ne.s32.totalorder %s104, %s105
      %p114 = scmp.eq.s32.totalorder %s17, 0
      %p115 = por %p113, %p114
      %p116 = scmp.ne.s32.totalorder %s104, %s105
      %p117 = scmp.eq.s32.totalorder %s18, 1
      %p118 = por %p116, %p117
      %p120 = scmp.ne.s32.totalorder %s105, %s119
      %p121 = scmp.eq.s32.totalorder %s18, 0
      %p122 = por %p120, %p121
      %s124 = sadd.s32 %s123, 1
      %p127 = scmp.eq.s32.totalorder %s12, 1
      %p128 = scmp.ne.s32.totalorder %s123, %s125
      %p129 = scmp.eq.s32.totalorder %s12, 0
      %p130 = por %p128, %p129
      %p131 = scmp.ne.s32.totalorder %s123, %s125
      %p132 = scmp.eq.s32.totalorder %s17, 1
      %p133 = por %p131, %p132
      %p134 = scmp.ne.s32.totalorder %s125, %s126
      %p135 = scmp.eq.s32.totalorder %s17, 0
      %p136 = por %p134, %p135
      %p137 = scmp.ne.s32.totalorder %s125, %s126
      %p138 = scmp.eq.s32.totalorder %s18, 1
      %p139 = por %p137, %p138
      %p141 = scmp.ne.s32.totalorder %s126, %s140
      %p142 = scmp.eq.s32.totalorder %s18, 0
      %p143 = por %p141, %p142
      %s144 = ssub.s32 %s19, %s31
      %p145 = scmp.eq.s32.totalorder %s144, 0
      %s147 = sadd.s32 %s146, 1
      %s148 = scalar_select %p145, %s146, %s147
      %p151 = pneg %p145
      %p152 = scmp.eq.s32.totalorder %s12, 1
      %p153 = por %p151, %p152
      %p154 = scmp.ne.s32.totalorder %s146, %s149
      %p155 = scmp.eq.s32.totalorder %s12, 0
      %p156 = por %p154, %p155
      %p157 = scmp.ne.s32.totalorder %s146, %s149
      %p158 = scmp.eq.s32.totalorder %s17, 1
      %p159 = por %p157, %p158
      %p160 = scmp.ne.s32.totalorder %s149, %s150
      %p161 = scmp.eq.s32.totalorder %s17, 0
      %p162 = por %p160, %p161
      %p163 = scmp.ne.s32.totalorder %s149, %s150
      %p164 = scmp.eq.s32.totalorder %s18, 1
      %p165 = por %p163, %p164
      %p167 = scmp.ne.s32.totalorder %s150, %s166
      %p168 = scmp.eq.s32.totalorder %s18, 0
      %p169 = por %p167, %p168
      %p170 = scmp.le.s32.totalorder 1, %s12
      %p171 = scmp.lt.s32.totalorder %s12, 3
      %p172 = pnand %p170, %p171
      %p173 = pneg %p172
      // Predicated region
      $region9: #{tpu_custom_call.1} parent=5 // pred_check
        _
      $region10: #{tpu_custom_call.1} parent=5 // pred_check_branch
        %175 = sbr.rel (%p172) target = $region12
      $region11: #{tpu_custom_call.1} parent=5 // pred_region
        %s176 = ssub.s32 %s12, 1
        // Predicated region
        $region13: #{tpu_custom_call.1} parent=11 // pred_check
          %p177 = pneg %p73
        $region14: #{tpu_custom_call.1} parent=11 // pred_check_branch
          %179 = sbr.rel (%p177) target = $region16
        $region15: #{tpu_custom_call.1} parent=11 // pred_region
          _
        $region16: #{tpu_custom_call.1} parent=11 // pred_fallthru
          _
        // Predicated region
        $region17: #{tpu_custom_call.1} parent=11 // pred_check
          %p180 = pneg %p94
        $region18: #{tpu_custom_call.1} parent=11 // pred_check_branch
          %182 = sbr.rel (%p180) target = $region20
        $region19: #{tpu_custom_call.1} parent=11 // pred_region
          _
        $region20: #{tpu_custom_call.1} parent=11 // pred_fallthru
          _
        // Predicated region
        $region21: #{tpu_custom_call.1} parent=11 // pred_check
          %p183 = pneg %p115
        $region22: #{tpu_custom_call.1} parent=11 // pred_check_branch
          %185 = sbr.rel (%p183) target = $region24
        $region23: #{tpu_custom_call.1} parent=11 // pred_region
          _
        $region24: #{tpu_custom_call.1} parent=11 // pred_fallthru
          _
        // Predicated region
        $region25: #{tpu_custom_call.1} parent=11 // pred_check
          %p186 = pneg %p136
        $region26: #{tpu_custom_call.1} parent=11 // pred_check_branch
          %188 = sbr.rel (%p186) target = $region28
        $region27: #{tpu_custom_call.1} parent=11 // pred_region
          _
        $region28: #{tpu_custom_call.1} parent=11 // pred_fallthru
          _
      $region12: #{tpu_custom_call.1} parent=5 // pred_fallthru
        _
      %p189 = scmp.lt.s32.totalorder %s12, 2
      // Predicated region
      $region29: #{tpu_custom_call.1} parent=5 // pred_check
        %p190 = pneg %p189
      $region30: #{tpu_custom_call.1} parent=5 // pred_check_branch
        %192 = sbr.rel (%p190) target = $region32
      $region31: #{tpu_custom_call.1} parent=5 // pred_region
        // Predicated region
        $region33: #{tpu_custom_call.1} parent=31 // pred_check
          %p193 = pneg %p46
        $region34: #{tpu_custom_call.1} parent=31 // pred_check_branch
          %195 = sbr.rel (%p193) target = $region36
        $region35: #{tpu_custom_call.1} parent=31 // pred_region
          %s196 = sand.u32 %s36, 1
          %s197 = sand.u32 %s36, 1
          %s198 = smul.addr %s197, 160
          %s199 = scalar_lea.vmem [#allocation3], %s198
          %s200 = smul.u32 8, %s19
          %s201 = smul.addr %s200, 10
          %s202 = sadd.s32 %s20, %s201
          %s203 = smul.addr %s202, 4
          %s204 = scalar_lea.vmem %s0, %s203
          // Predicated region
          $region37: #{tpu_custom_call.1} parent=35 // pred_check
            _
          $region38: #{tpu_custom_call.1} parent=35 // pred_check_branch
            %206 = sbr.rel (0) target = $region40
          $region39: #{tpu_custom_call.1} parent=35 // pred_region
            // Predicated region
            $region41: #{tpu_custom_call.1} parent=39 // pred_check
              _
            $region42: #{tpu_custom_call.1} parent=39 // pred_check_branch
              %208 = sbr.rel target = $region44
            $region43: #{tpu_custom_call.1} parent=39 // pred_region
              // Predicated region
              $region56: #{tpu_custom_call.1} parent=43 // pred_check
                _
              $region57: #{tpu_custom_call.1} parent=43 // pred_check_branch
                %301 = sbr.rel (0) target = $region59
              $region58: #{tpu_custom_call.1} parent=43 // pred_region
                loop: start=0, step=1, limit=1
                $region60: #{tpu_custom_call.1} parent=58 // loop_pre_header
                  _
                $region61: #{tpu_custom_call.1} parent=58 // loop_header
                  %s303 = sphi 0, %s307
                  %p304 = scmp.ge.s32.totalorder %s303, 1
                  %s308 = sphi %s204, %s204
                  %s309 = sphi %s199, %s199
                $region62: #{tpu_custom_call.1} parent=58 // loop_header_branch
                  %306 = sbr.rel (%p304) target = $region66
                $region63: #{tpu_custom_call.1} parent=58 // loop_body
                  _
                $region64: #{tpu_custom_call.1} parent=58 // loop_footer
                  %s307 = sadd.s32 1, %s303
                $region65: #{tpu_custom_call.1} parent=58 // loop_footer_branch
                  %302 = sbr.rel target = $region61
                $region66: #{tpu_custom_call.1} parent=58 // loop_exit
                  _
                loop: start=0, step=1, limit=1
                $region67: #{tpu_custom_call.1} parent=58 // loop_pre_header
                  _
                $region68: #{tpu_custom_call.1} parent=58 // loop_header
                  %s312 = sphi 0, %s316
                  %p313 = scmp.ge.s32.totalorder %s312, 1
                  %s317 = sphi %s204, %s204
                  %s318 = sphi %s199, %s199
                $region69: #{tpu_custom_call.1} parent=58 // loop_header_branch
                  %315 = sbr.rel (%p313) target = $region73
                $region70: #{tpu_custom_call.1} parent=58 // loop_body
                  %v319 = vld [vmem:[%s317] sm:$0xf]
                  %320 = vst [vmem:[%s318] sm:$0xf] %v319
                  %v321 = vld [vmem:[%s317 + $0x8] sm:$0xf]
                  %322 = vst [vmem:[%s318 + $0x4] sm:$0xf] %v321
                  %v323 = vld [vmem:[%s317 + $0x10] sm:$0xf]
                  %324 = vst [vmem:[%s318 + $0x8] sm:$0xf] %v323
                  %v325 = vld [vmem:[%s317 + $0x18] sm:$0xf]
                  %326 = vst [vmem:[%s318 + $0xc] sm:$0xf] %v325
                  %v327 = vld [vmem:[%s317 + $0x20] sm:$0xf]
                  %328 = vst [vmem:[%s318 + $0x10] sm:$0xf] %v327
                  %v329 = vld [vmem:[%s317 + $0x28] sm:$0xf]
                  %330 = vst [vmem:[%s318 + $0x14] sm:$0xf] %v329
                  %v331 = vld [vmem:[%s317 + $0x30] sm:$0xf]
                  %332 = vst [vmem:[%s318 + $0x18] sm:$0xf] %v331
                  %v333 = vld [vmem:[%s317 + $0x38] sm:$0xf]
                  %334 = vst [vmem:[%s318 + $0x1c] sm:$0xf] %v333
                  %v335 = vld [vmem:[%s317 + $0x40] sm:$0xf]
                  %336 = vst [vmem:[%s318 + $0x20] sm:$0xf] %v335
                  %v337 = vld [vmem:[%s317 + $0x48] sm:$0xf]
                  %338 = vst [vmem:[%s318 + $0x24] sm:$0xf] %v337
                  %v339 = vld [vmem:[%s317 + $0x50] sm:$0xf]
                  %340 = vst [vmem:[%s318 + $0x28] sm:$0xf] %v339
                  %v341 = vld [vmem:[%s317 + $0x58] sm:$0xf]
                  %342 = vst [vmem:[%s318 + $0x2c] sm:$0xf] %v341
                  %v343 = vld [vmem:[%s317 + $0x60] sm:$0xf]
                  %344 = vst [vmem:[%s318 + $0x30] sm:$0xf] %v343
                  %v345 = vld [vmem:[%s317 + $0x68] sm:$0xf]
                  %346 = vst [vmem:[%s318 + $0x34] sm:$0xf] %v345
                  %v347 = vld [vmem:[%s317 + $0x70] sm:$0xf]
                  %348 = vst [vmem:[%s318 + $0x38] sm:$0xf] %v347
                  %v349 = vld [vmem:[%s317 + $0x78] sm:$0xf]
                  %350 = vst [vmem:[%s318 + $0x3c] sm:$0xf] %v349
                  %v351 = vld [vmem:[%s317 + $0x80] sm:$0xf]
                  %352 = vst [vmem:[%s318 + $0x40] sm:$0xf] %v351
                  %v353 = vld [vmem:[%s317 + $0x88] sm:$0xf]
                  %354 = vst [vmem:[%s318 + $0x44] sm:$0xf] %v353
                  %v355 = vld [vmem:[%s317 + $0x90] sm:$0xf]
                  %356 = vst [vmem:[%s318 + $0x48] sm:$0xf] %v355
                  %v357 = vld [vmem:[%s317 + $0x98] sm:$0xf]
                  %358 = vst [vmem:[%s318 + $0x4c] sm:$0xf] %v357
                  %v359 = vld [vmem:[%s317 + $0xa0] sm:$0xf]
                  %360 = vst [vmem:[%s318 + $0x50] sm:$0xf] %v359
                  %v361 = vld [vmem:[%s317 + $0xa8] sm:$0xf]
                  %362 = vst [vmem:[%s318 + $0x54] sm:$0xf] %v361
                  %v363 = vld [vmem:[%s317 + $0xb0] sm:$0xf]
                  %364 = vst [vmem:[%s318 + $0x58] sm:$0xf] %v363
                  %v365 = vld [vmem:[%s317 + $0xb8] sm:$0xf]
                  %366 = vst [vmem:[%s318 + $0x5c] sm:$0xf] %v365
                  %v367 = vld [vmem:[%s317 + $0xc0] sm:$0xf]
                  %368 = vst [vmem:[%s318 + $0x60] sm:$0xf] %v367
                  %v369 = vld [vmem:[%s317 + $0xc8] sm:$0xf]
                  %370 = vst [vmem:[%s318 + $0x64] sm:$0xf] %v369
                  %v371 = vld [vmem:[%s317 + $0xd0] sm:$0xf]
                  %372 = vst [vmem:[%s318 + $0x68] sm:$0xf] %v371
                  %v373 = vld [vmem:[%s317 + $0xd8] sm:$0xf]
                  %374 = vst [vmem:[%s318 + $0x6c] sm:$0xf] %v373
                  %v375 = vld [vmem:[%s317 + $0xe0] sm:$0xf]
                  %376 = vst [vmem:[%s318 + $0x70] sm:$0xf] %v375
                  %v377 = vld [vmem:[%s317 + $0xe8] sm:$0xf]
                  %378 = vst [vmem:[%s318 + $0x74] sm:$0xf] %v377
                  %v379 = vld [vmem:[%s317 + $0xf0] sm:$0xf]
                  %380 = vst [vmem:[%s318 + $0x78] sm:$0xf] %v379
                  %v381 = vld [vmem:[%s317 + $0xf8] sm:$0xf]
                  %382 = vst [vmem:[%s318 + $0x7c] sm:$0xf] %v381
                  %v383 = vld [vmem:[%s317 + $0x100] sm:$0xf]
                  %384 = vst [vmem:[%s318 + $0x80] sm:$0xf] %v383
                  %v385 = vld [vmem:[%s317 + $0x108] sm:$0xf]
                  %386 = vst [vmem:[%s318 + $0x84] sm:$0xf] %v385
                  %v387 = vld [vmem:[%s317 + $0x110] sm:$0xf]
                  %388 = vst [vmem:[%s318 + $0x88] sm:$0xf] %v387
                  %v389 = vld [vmem:[%s317 + $0x118] sm:$0xf]
                  %390 = vst [vmem:[%s318 + $0x8c] sm:$0xf] %v389
                  %v391 = vld [vmem:[%s317 + $0x120] sm:$0xf]
                  %392 = vst [vmem:[%s318 + $0x90] sm:$0xf] %v391
                  %v393 = vld [vmem:[%s317 + $0x128] sm:$0xf]
                  %394 = vst [vmem:[%s318 + $0x94] sm:$0xf] %v393
                  %v395 = vld [vmem:[%s317 + $0x130] sm:$0xf]
                  %396 = vst [vmem:[%s318 + $0x98] sm:$0xf] %v395
                  %v397 = vld [vmem:[%s317 + $0x138] sm:$0xf]
                  %398 = vst [vmem:[%s318 + $0x9c] sm:$0xf] %v397
                $region71: #{tpu_custom_call.1} parent=58 // loop_footer
                  %s316 = sadd.s32 1, %s312
                $region72: #{tpu_custom_call.1} parent=58 // loop_footer_branch
                  %311 = sbr.rel target = $region68
                $region73: #{tpu_custom_call.1} parent=58 // loop_exit
                  _
              $region59: #{tpu_custom_call.1} parent=43 // pred_fallthru
                _
            $region44: #{tpu_custom_call.1} parent=39 // pred_fallthru
              _
            // Predicated region
            $region45: #{tpu_custom_call.1} parent=39 // pred_check
              _
            $region46: #{tpu_custom_call.1} parent=39 // pred_check_branch
              %210 = sbr.rel (0) target = $region48
            $region47: #{tpu_custom_call.1} parent=39 // pred_region
              loop: start=0, step=1, limit=1
              $region49: #{tpu_custom_call.1} parent=47 // loop_pre_header
                _
              $region50: #{tpu_custom_call.1} parent=47 // loop_header
                %s213 = sphi 0, %s217
                %p214 = scmp.ge.s32.totalorder %s213, 1
                %s218 = sphi %s204, %s204
                %s219 = sphi %s199, %s199
              $region51: #{tpu_custom_call.1} parent=47 // loop_header_branch
                %216 = sbr.rel (%p214) target = $region55
              $region52: #{tpu_custom_call.1} parent=47 // loop_body
                %v220 = vld [vmem:[%s218] sm:$0xf]
                %221 = vst [vmem:[%s219] sm:$0xf] %v220
                %v222 = vld [vmem:[%s218 + $0x8] sm:$0xf]
                %223 = vst [vmem:[%s219 + $0x4] sm:$0xf] %v222
                %v224 = vld [vmem:[%s218 + $0x10] sm:$0xf]
                %225 = vst [vmem:[%s219 + $0x8] sm:$0xf] %v224
                %v226 = vld [vmem:[%s218 + $0x18] sm:$0xf]
                %227 = vst [vmem:[%s219 + $0xc] sm:$0xf] %v226
                %v228 = vld [vmem:[%s218 + $0x20] sm:$0xf]
                %229 = vst [vmem:[%s219 + $0x10] sm:$0xf] %v228
                %v230 = vld [vmem:[%s218 + $0x28] sm:$0xf]
                %231 = vst [vmem:[%s219 + $0x14] sm:$0xf] %v230
                %v232 = vld [vmem:[%s218 + $0x30] sm:$0xf]
                %233 = vst [vmem:[%s219 + $0x18] sm:$0xf] %v232
                %v234 = vld [vmem:[%s218 + $0x38] sm:$0xf]
                %235 = vst [vmem:[%s219 + $0x1c] sm:$0xf] %v234
                %v236 = vld [vmem:[%s218 + $0x40] sm:$0xf]
                %237 = vst [vmem:[%s219 + $0x20] sm:$0xf] %v236
                %v238 = vld [vmem:[%s218 + $0x48] sm:$0xf]
                %239 = vst [vmem:[%s219 + $0x24] sm:$0xf] %v238
                %v240 = vld [vmem:[%s218 + $0x50] sm:$0xf]
                %241 = vst [vmem:[%s219 + $0x28] sm:$0xf] %v240
                %v242 = vld [vmem:[%s218 + $0x58] sm:$0xf]
                %243 = vst [vmem:[%s219 + $0x2c] sm:$0xf] %v242
                %v244 = vld [vmem:[%s218 + $0x60] sm:$0xf]
                %245 = vst [vmem:[%s219 + $0x30] sm:$0xf] %v244
                %v246 = vld [vmem:[%s218 + $0x68] sm:$0xf]
                %247 = vst [vmem:[%s219 + $0x34] sm:$0xf] %v246
                %v248 = vld [vmem:[%s218 + $0x70] sm:$0xf]
                %249 = vst [vmem:[%s219 + $0x38] sm:$0xf] %v248
                %v250 = vld [vmem:[%s218 + $0x78] sm:$0xf]
                %251 = vst [vmem:[%s219 + $0x3c] sm:$0xf] %v250
                %v252 = vld [vmem:[%s218 + $0x80] sm:$0xf]
                %253 = vst [vmem:[%s219 + $0x40] sm:$0xf] %v252
                %v254 = vld [vmem:[%s218 + $0x88] sm:$0xf]
                %255 = vst [vmem:[%s219 + $0x44] sm:$0xf] %v254
                %v256 = vld [vmem:[%s218 + $0x90] sm:$0xf]
                %257 = vst [vmem:[%s219 + $0x48] sm:$0xf] %v256
                %v258 = vld [vmem:[%s218 + $0x98] sm:$0xf]
                %259 = vst [vmem:[%s219 + $0x4c] sm:$0xf] %v258
                %v260 = vld [vmem:[%s218 + $0xa0] sm:$0xf]
                %261 = vst [vmem:[%s219 + $0x50] sm:$0xf] %v260
                %v262 = vld [vmem:[%s218 + $0xa8] sm:$0xf]
                %263 = vst [vmem:[%s219 + $0x54] sm:$0xf] %v262
                %v264 = vld [vmem:[%s218 + $0xb0] sm:$0xf]
                %265 = vst [vmem:[%s219 + $0x58] sm:$0xf] %v264
                %v266 = vld [vmem:[%s218 + $0xb8] sm:$0xf]
                %267 = vst [vmem:[%s219 + $0x5c] sm:$0xf] %v266
                %v268 = vld [vmem:[%s218 + $0xc0] sm:$0xf]
                %269 = vst [vmem:[%s219 + $0x60] sm:$0xf] %v268
                %v270 = vld [vmem:[%s218 + $0xc8] sm:$0xf]
                %271 = vst [vmem:[%s219 + $0x64] sm:$0xf] %v270
                %v272 = vld [vmem:[%s218 + $0xd0] sm:$0xf]
                %273 = vst [vmem:[%s219 + $0x68] sm:$0xf] %v272
                %v274 = vld [vmem:[%s218 + $0xd8] sm:$0xf]
                %275 = vst [vmem:[%s219 + $0x6c] sm:$0xf] %v274
                %v276 = vld [vmem:[%s218 + $0xe0] sm:$0xf]
                %277 = vst [vmem:[%s219 + $0x70] sm:$0xf] %v276
                %v278 = vld [vmem:[%s218 + $0xe8] sm:$0xf]
                %279 = vst [vmem:[%s219 + $0x74] sm:$0xf] %v278
                %v280 = vld [vmem:[%s218 + $0xf0] sm:$0xf]
                %281 = vst [vmem:[%s219 + $0x78] sm:$0xf] %v280
                %v282 = vld [vmem:[%s218 + $0xf8] sm:$0xf]
                %283 = vst [vmem:[%s219 + $0x7c] sm:$0xf] %v282
                %v284 = vld [vmem:[%s218 + $0x100] sm:$0xf]
                %285 = vst [vmem:[%s219 + $0x80] sm:$0xf] %v284
                %v286 = vld [vmem:[%s218 + $0x108] sm:$0xf]
                %287 = vst [vmem:[%s219 + $0x84] sm:$0xf] %v286
                %v288 = vld [vmem:[%s218 + $0x110] sm:$0xf]
                %289 = vst [vmem:[%s219 + $0x88] sm:$0xf] %v288
                %v290 = vld [vmem:[%s218 + $0x118] sm:$0xf]
                %291 = vst [vmem:[%s219 + $0x8c] sm:$0xf] %v290
                %v292 = vld [vmem:[%s218 + $0x120] sm:$0xf]
                %293 = vst [vmem:[%s219 + $0x90] sm:$0xf] %v292
                %v294 = vld [vmem:[%s218 + $0x128] sm:$0xf]
                %295 = vst [vmem:[%s219 + $0x94] sm:$0xf] %v294
                %v296 = vld [vmem:[%s218 + $0x130] sm:$0xf]
                %297 = vst [vmem:[%s219 + $0x98] sm:$0xf] %v296
                %v298 = vld [vmem:[%s218 + $0x138] sm:$0xf]
                %299 = vst [vmem:[%s219 + $0x9c] sm:$0xf] %v298
              $region53: #{tpu_custom_call.1} parent=47 // loop_footer
                %s217 = sadd.s32 1, %s213
              $region54: #{tpu_custom_call.1} parent=47 // loop_footer_branch
                %212 = sbr.rel target = $region50
              $region55: #{tpu_custom_call.1} parent=47 // loop_exit
                _
            $region48: #{tpu_custom_call.1} parent=39 // pred_fallthru
              _
          $region40: #{tpu_custom_call.1} parent=35 // pred_fallthru
            _
          %399 = vnop
        $region36: #{tpu_custom_call.1} parent=31 // pred_fallthru
          _
      $region32: #{tpu_custom_call.1} parent=5 // pred_fallthru
        _
      %p400 = scmp.le.s32.totalorder 1, %s12
      %p401 = scmp.lt.s32.totalorder %s12, 3
      %p402 = pnand %p400, %p401
      %p403 = pneg %p402
      // Predicated region
      $region74: #{tpu_custom_call.1} parent=5 // pred_check
        _
      $region75: #{tpu_custom_call.1} parent=5 // pred_check_branch
        %405 = sbr.rel (%p402) target = $region77
      $region76: #{tpu_custom_call.1} parent=5 // pred_region
        %s406 = ssub.s32 %s12, 1
        %s407 = sand.u32 %s39, 1
        %s408 = sand.u32 %s39, 1
        %s409 = smul.addr %s408, 160
        %s410 = scalar_lea.vmem [#allocation3], %s409
        // Predicated region
        $region78: #{tpu_custom_call.1} parent=76 // pred_check
          %p411 = pneg %p52
        $region79: #{tpu_custom_call.1} parent=76 // pred_check_branch
          %413 = sbr.rel (%p411) target = $region81
        $region80: #{tpu_custom_call.1} parent=76 // pred_region
          _
        $region81: #{tpu_custom_call.1} parent=76 // pred_fallthru
          _
        %s414 = sand.u32 %s39, 1
        %s415 = sand.u32 %s39, 1
        %s416 = smul.addr %s415, 160
        %s417 = scalar_lea.vmem [#allocation3], %s416
        %p418 = pneg %p52
        %p419 = pneg %p49
        %p420 = pneg %p73
        %p421 = pneg %p70
        %p422 = pneg %p94
        %p423 = pneg %p91
        %p424 = pneg %p115
        %p425 = pneg %p112
        %p426 = pneg %p136
        %p427 = pneg %p133
        %p428 = pneg %p162
        %p429 = pneg %p159
        %s430 = smul.u32 8, %s21
        %p432 = scmp.eq.s32.totalorder %s22, 0
        // Predicated region
        $region82: #{tpu_custom_call.1} parent=76 // pred_check
          %p433 = pneg %p432
        $region83: #{tpu_custom_call.1} parent=76 // pred_check_branch
          %435 = sbr.rel (%p433) target = $region85
        $region84: #{tpu_custom_call.1} parent=76 // pred_region
          %vm436 = vcmask 261120
          %437 = vst.msk [vmem:[#allocation2] sm:$0xff] %vm436, 0.0
        $region85: #{tpu_custom_call.1} parent=76 // pred_fallthru
          _
        %v438 = vld [vmem:[%s1] sm:$0xf]
        %v439 = vld [vmem:[%s1 + $0x4] sm:$0xf]
        %v440 = vld [vmem:[%s1 + $0x8] sm:$0xf]
        %v441 = vld [vmem:[%s1 + $0xc] sm:$0xf]
        %v442 = vld [vmem:[%s1 + $0x10] sm:$0xf]
        %v443 = vld [vmem:[%s1 + $0x14] sm:$0xf]
        %v444 = vld [vmem:[%s1 + $0x18] sm:$0xf]
        %v445 = vld [vmem:[%s1 + $0x1c] sm:$0xf]
        %v446 = vld [vmem:[%s1 + $0x20] sm:$0xf]
        %v447 = vld [vmem:[%s1 + $0x24] sm:$0xf]
        %v448 = vld [vmem:[%s1 + $0x28] sm:$0xf]
        %v449 = vld [vmem:[%s1 + $0x2c] sm:$0xf]
        %v450 = vld [vmem:[%s1 + $0x30] sm:$0xf]
        %v451 = vld [vmem:[%s1 + $0x34] sm:$0xf]
        %v452 = vld [vmem:[%s1 + $0x38] sm:$0xf]
        %v453 = vld [vmem:[%s1 + $0x3c] sm:$0xf]
        %v454 = vld [vmem:[%s1 + $0x40] sm:$0xf]
        %v455 = vld [vmem:[%s1 + $0x44] sm:$0xf]
        %v456 = vld [vmem:[%s1 + $0x48] sm:$0xf]
        %v457 = vld [vmem:[%s1 + $0x4c] sm:$0xf]
        %v458 = vld [vmem:[%s1 + $0x50] sm:$0xf]
        %v459 = vld [vmem:[%s1 + $0x54] sm:$0xf]
        %v460 = vld [vmem:[%s1 + $0x58] sm:$0xf]
        %v461 = vld [vmem:[%s1 + $0x5c] sm:$0xf]
        %v462 = vld [vmem:[%s1 + $0x60] sm:$0xf]
        %v463 = vld [vmem:[%s1 + $0x64] sm:$0xf]
        %v464 = vld [vmem:[%s1 + $0x68] sm:$0xf]
        %v465 = vld [vmem:[%s1 + $0x6c] sm:$0xf]
        %v466 = vld [vmem:[%s1 + $0x70] sm:$0xf]
        %v467 = vld [vmem:[%s1 + $0x74] sm:$0xf]
        %v468 = vld [vmem:[%s1 + $0x78] sm:$0xf]
        %v469 = vld [vmem:[%s1 + $0x7c] sm:$0xf]
        %v470 = vld [vmem:[%s410] sm:$0xf]
        %v471 = vld [vmem:[%s410 + $0x4] sm:$0xf]
        %v472 = vld [vmem:[%s410 + $0x8] sm:$0xf]
        %v473 = vld [vmem:[%s410 + $0xc] sm:$0xf]
        %v474 = vld [vmem:[%s410 + $0x10] sm:$0x3]
        %v475 = vld [vmem:[%s410 + $0x14] sm:$0xf]
        %v476 = vld [vmem:[%s410 + $0x18] sm:$0xf]
        %v477 = vld [vmem:[%s410 + $0x1c] sm:$0xf]
        %v478 = vld [vmem:[%s410 + $0x20] sm:$0xf]
        %v479 = vld [vmem:[%s410 + $0x24] sm:$0x3]
        %v480 = vld [vmem:[%s410 + $0x28] sm:$0xf]
        %v481 = vld [vmem:[%s410 + $0x2c] sm:$0xf]
        %v482 = vld [vmem:[%s410 + $0x30] sm:$0xf]
        %v483 = vld [vmem:[%s410 + $0x34] sm:$0xf]
        %v484 = vld [vmem:[%s410 + $0x38] sm:$0x3]
        %v485 = vld [vmem:[%s410 + $0x3c] sm:$0xf]
        %v486 = vld [vmem:[%s410 + $0x40] sm:$0xf]
        %v487 = vld [vmem:[%s410 + $0x44] sm:$0xf]
        %v488 = vld [vmem:[%s410 + $0x48] sm:$0xf]
        %v489 = vld [vmem:[%s410 + $0x4c] sm:$0x3]
        %v490 = vld [vmem:[%s410 + $0x50] sm:$0xf]
        %v491 = vld [vmem:[%s410 + $0x54] sm:$0xf]
        %v492 = vld [vmem:[%s410 + $0x58] sm:$0xf]
        %v493 = vld [vmem:[%s410 + $0x5c] sm:$0xf]
        %v494 = vld [vmem:[%s410 + $0x60] sm:$0x3]
        %v495 = vld [vmem:[%s410 + $0x64] sm:$0xf]
        %v496 = vld [vmem:[%s410 + $0x68] sm:$0xf]
        %v497 = vld [vmem:[%s410 + $0x6c] sm:$0xf]
        %v498 = vld [vmem:[%s410 + $0x70] sm:$0xf]
        %v499 = vld [vmem:[%s410 + $0x74] sm:$0x3]
        %v500 = vld [vmem:[%s410 + $0x78] sm:$0xf]
        %v501 = vld [vmem:[%s410 + $0x7c] sm:$0xf]
        %v502 = vld [vmem:[%s410 + $0x80] sm:$0xf]
        %v503 = vld [vmem:[%s410 + $0x84] sm:$0xf]
        %v504 = vld [vmem:[%s410 + $0x88] sm:$0x3]
        %v505 = vld [vmem:[%s410 + $0x8c] sm:$0xf]
        %v506 = vld [vmem:[%s410 + $0x90] sm:$0xf]
        %v507 = vld [vmem:[%s410 + $0x94] sm:$0xf]
        %v508 = vld [vmem:[%s410 + $0x98] sm:$0xf]
        %v509 = vld [vmem:[%s410 + $0x9c] sm:$0x3]
        %v510 = vld [vmem:[%s2] sm:$0xff]
        %v511 = vld [vmem:[%s2 + $0x8] sm:$0xff]
        %v512 = vld [vmem:[%s2 + $0x10] sm:$0xff]
        %v513 = vld [vmem:[%s2 + $0x18] sm:$0xff]
        %515 = vset.pattern.permute.xlu0 0
        %516 = vperm.xlu0 %515, %v510
        %v517 = vpop.permute.xlu0 %516
        %520 = vset.pattern.permute.xlu0 0
        %521 = vperm.xlu0 %520, %v511
        %v522 = vpop.permute.xlu0 %521
        %525 = vset.pattern.permute.xlu0 0
        %526 = vperm.xlu0 %525, %v512
        %v527 = vpop.permute.xlu0 %526
        %530 = vset.pattern.permute.xlu0 0
        %531 = vperm.xlu0 %530, %v513
        %v532 = vpop.permute.xlu0 %531
        %v538 = vunpack.c.l.b16 %v438
        %v539 = vunpack.c.l.b16 %v439
        %v540 = vunpack.c.l.b16 %v440
        %v541 = vunpack.c.l.b16 %v441
        %v542 = vpack.c.b16 %v539, %v538
        %v543 = vpack.c.b16 %v541, %v540
        %v549 = vunpack.c.l.b16 %v470
        %v550 = vunpack.c.l.b16 %v471
        %v551 = vunpack.c.l.b16 %v472
        %v552 = vunpack.c.l.b16 %v473
        %v553 = vunpack.c.l.b16 %v474
        %v554 = vpack.c.b16 %v550, %v549
        %v555 = vpack.c.b16 %v552, %v551
        %v556 = vpack.c.b16 %v553, %v553
        %vm559 = vcmask 293888
        %v561 = vsel %vm559, %v542, 0
        %v564 = vsel %vm559, %v543, 0
        %vm566 = vcmask 1041408
        %v568 = vsel %vm566, %v556, 0
        %570 = vmatprep.subr.bf16.mxu0 0
        %571 = vmatpush1.bf16.msra.mxu0 %v554
        %572 = vmatprep.subr.bf16.mxu0 0
        %573 = vmatpush1.bf16.msra.mxu0 %v555
        %574 = vmatprep.subr.bf16.mxu0 0
        %575 = vmatpush1.bf16.msra.mxu0 %v568
        %576 = vmatprep.subr.bf16.mxu0 0
        %577 = vmatpush1.bf16.msra.mxu0 0
        %578 = vmatprep.subr.bf16.mxu0 0
        %579 = vmatpush1.bf16.msra.mxu0 0
        %580 = vmatprep.subr.bf16.mxu0 0
        %581 = vmatpush1.bf16.msra.mxu0 0
        %582 = vmatprep.subr.bf16.mxu0 0
        %583 = vmatpush1.bf16.msra.mxu0 0
        %584 = vmatprep.subr.bf16.mxu0 0
        %585 = vmatpush1.bf16.msra.mxu0 0
        %586 = vmatprep.subr.bf16.mxu0 0
        %587 = vmatpush1.bf16.msra.mxu0 0
        %588 = vmatprep.subr.bf16.mxu0 0
        %589 = vmatpush1.bf16.msra.mxu0 0
        %590 = vmatprep.subr.bf16.mxu0 0
        %591 = vmatpush1.bf16.msra.mxu0 0
        %592 = vmatprep.subr.bf16.mxu0 0
        %593 = vmatpush1.bf16.msra.mxu0 0
        %594 = vmatprep.subr.bf16.mxu0 0
        %595 = vmatpush1.bf16.msra.mxu0 0
        %596 = vmatprep.subr.bf16.mxu0 0
        %597 = vmatpush1.bf16.msra.mxu0 0
        %598 = vmatprep.subr.bf16.mxu0 0
        %599 = vmatpush1.bf16.msra.mxu0 0
        %600 = vmatprep.subr.bf16.mxu0 0
        %601 = vmatpush1.bf16.msra.mxu0 0
        %602 = vmatprep.mubr.bf16.mxu0 0
        %603 = vmatmul.mubr.bf16.gmra.mrb[0].mxu0 %v561
        %v604 = vpop.f32.mrb[0].mxu0
        %v605 = vadd.f32 %v517, %v604
        %v606 = vpop.f32.mrb[0].mxu0
        %v607 = vpop.f32.mrb[0].mxu0
        %v608 = vadd.f32 %v522, %v607
        %v609 = vpop.f32.mrb[0].mxu0
        %610 = vmatprep.mubr.bf16.mxu0 0
        %611 = vmatmul.mubr.bf16.gmra.mrb[0].mxu0 %v564
        %v612 = vpop.f32.mrb[0].mxu0
        %v613 = vadd.f32 %v527, %v612
        %v614 = vpop.f32.mrb[0].mxu0
        %v615 = vpop.f32.mrb[0].mxu0
        %v616 = vadd.f32 %v532, %v615
        %v617 = vpop.f32.mrb[0].mxu0
        %618 = vdwg.mxu0
        %v623 = vunpack.c.l.b16 %v442
        %v624 = vunpack.c.l.b16 %v443
        %v625 = vunpack.c.l.b16 %v444
        %v626 = vunpack.c.l.b16 %v445
        %v627 = vpack.c.b16 %v624, %v623
        %v628 = vpack.c.b16 %v626, %v625
        %v634 = vunpack.c.l.b16 %v475
        %v635 = vunpack.c.l.b16 %v476
        %v636 = vunpack.c.l.b16 %v477
        %v637 = vunpack.c.l.b16 %v478
        %v638 = vunpack.c.l.b16 %v479
        %v639 = vpack.c.b16 %v635, %v634
        %v640 = vpack.c.b16 %v637, %v636
        %v641 = vpack.c.b16 %v638, %v638
        %v645 = vsel %vm559, %v627, 0
        %v648 = vsel %vm559, %v628, 0
        %v651 = vsel %vm566, %v641, 0
        %653 = vmatprep.subr.bf16.mxu0 0
        %654 = vmatpush1.bf16.msra.mxu0 %v639
        %655 = vmatprep.subr.bf16.mxu0 0
        %656 = vmatpush1.bf16.msra.mxu0 %v640
        %657 = vmatprep.subr.bf16.mxu0 0
        %658 = vmatpush1.bf16.msra.mxu0 %v651
        %659 = vmatprep.subr.bf16.mxu0 0
        %660 = vmatpush1.bf16.msra.mxu0 0
        %661 = vmatprep.subr.bf16.mxu0 0
        %662 = vmatpush1.bf16.msra.mxu0 0
        %663 = vmatprep.subr.bf16.mxu0 0
        %664 = vmatpush1.bf16.msra.mxu0 0
        %665 = vmatprep.subr.bf16.mxu0 0
        %666 = vmatpush1.bf16.msra.mxu0 0
        %667 = vmatprep.subr.bf16.mxu0 0
        %668 = vmatpush1.bf16.msra.mxu0 0
        %669 = vmatprep.subr.bf16.mxu0 0
        %670 = vmatpush1.bf16.msra.mxu0 0
        %671 = vmatprep.subr.bf16.mxu0 0
        %672 = vmatpush1.bf16.msra.mxu0 0
        %673 = vmatprep.subr.bf16.mxu0 0
        %674 = vmatpush1.bf16.msra.mxu0 0
        %675 = vmatprep.subr.bf16.mxu0 0
        %676 = vmatpush1.bf16.msra.mxu0 0
        %677 = vmatprep.subr.bf16.mxu0 0
        %678 = vmatpush1.bf16.msra.mxu0 0
        %679 = vmatprep.subr.bf16.mxu0 0
        %680 = vmatpush1.bf16.msra.mxu0 0
        %681 = vmatprep.subr.bf16.mxu0 0
        %682 = vmatpush1.bf16.msra.mxu0 0
        %683 = vmatprep.subr.bf16.mxu0 0
        %684 = vmatpush1.bf16.msra.mxu0 0
        %685 = vmatprep.mubr.bf16.mxu0 0
        %686 = vmatmul.mubr.bf16.gmra.mrb[0].mxu0 %v645
        %v687 = vpop.f32.mrb[0].mxu0
        %v688 = vadd.f32 %v517, %v687
        %v689 = vpop.f32.mrb[0].mxu0
        %v690 = vpop.f32.mrb[0].mxu0
        %v691 = vadd.f32 %v522, %v690
        %v692 = vpop.f32.mrb[0].mxu0
        %693 = vmatprep.mubr.bf16.mxu0 0
        %694 = vmatmul.mubr.bf16.gmra.mrb[0].mxu0 %v648
        %v695 = vpop.f32.mrb[0].mxu0
        %v696 = vadd.f32 %v527, %v695
        %v697 = vpop.f32.mrb[0].mxu0
        %v698 = vpop.f32.mrb[0].mxu0
        %v699 = vadd.f32 %v532, %v698
        %v700 = vpop.f32.mrb[0].mxu0
        %701 = vdwg.mxu0
        %v706 = vunpack.c.l.b16 %v446
        %v707 = vunpack.c.l.b16 %v447
        %v708 = vunpack.c.l.b16 %v448
        %v709 = vunpack.c.l.b16 %v449
        %v710 = vpack.c.b16 %v707, %v706
        %v711 = vpack.c.b16 %v709, %v708
        %v717 = vunpack.c.l.b16 %v480
        %v718 = vunpack.c.l.b16 %v481
        %v719 = vunpack.c.l.b16 %v482
        %v720 = vunpack.c.l.b16 %v483
        %v721 = vunpack.c.l.b16 %v484
        %v722 = vpack.c.b16 %v718, %v717
        %v723 = vpack.c.b16 %v720, %v719
        %v724 = vpack.c.b16 %v721, %v721
        %v728 = vsel %vm559, %v710, 0
        %v731 = vsel %vm559, %v711, 0
        %v734 = vsel %vm566, %v724, 0
        %736 = vmatprep.subr.bf16.mxu0 0
        %737 = vmatpush1.bf16.msra.mxu0 %v722
        %738 = vmatprep.subr.bf16.mxu0 0
        %739 = vmatpush1.bf16.msra.mxu0 %v723
        %740 = vmatprep.subr.bf16.mxu0 0
        %741 = vmatpush1.bf16.msra.mxu0 %v734
        %742 = vmatprep.subr.bf16.mxu0 0
        %743 = vmatpush1.bf16.msra.mxu0 0
        %744 = vmatprep.subr.bf16.mxu0 0
        %745 = vmatpush1.bf16.msra.mxu0 0
        %746 = vmatprep.subr.bf16.mxu0 0
        %747 = vmatpush1.bf16.msra.mxu0 0
        %748 = vmatprep.subr.bf16.mxu0 0
        %749 = vmatpush1.bf16.msra.mxu0 0
        %750 = vmatprep.subr.bf16.mxu0 0
        %751 = vmatpush1.bf16.msra.mxu0 0
        %752 = vmatprep.subr.bf16.mxu0 0
        %753 = vmatpush1.bf16.msra.mxu0 0
        %754 = vmatprep.subr.bf16.mxu0 0
        %755 = vmatpush1.bf16.msra.mxu0 0
        %756 = vmatprep.subr.bf16.mxu0 0
        %757 = vmatpush1.bf16.msra.mxu0 0
        %758 = vmatprep.subr.bf16.mxu0 0
        %759 = vmatpush1.bf16.msra.mxu0 0
        %760 = vmatprep.subr.bf16.mxu0 0
        %761 = vmatpush1.bf16.msra.mxu0 0
        %762 = vmatprep.subr.bf16.mxu0 0
        %763 = vmatpush1.bf16.msra.mxu0 0
        %764 = vmatprep.subr.bf16.mxu0 0
        %765 = vmatpush1.bf16.msra.mxu0 0
        %766 = vmatprep.subr.bf16.mxu0 0
        %767 = vmatpush1.bf16.msra.mxu0 0
        %768 = vmatprep.mubr.bf16.mxu0 0
        %769 = vmatmul.mubr.bf16.gmra.mrb[0].mxu0 %v728
        %v770 = vpop.f32.mrb[0].mxu0
        %v771 = vadd.f32 %v517, %v770
        %v772 = vpop.f32.mrb[0].mxu0
        %v773 = vpop.f32.mrb[0].mxu0
        %v774 = vadd.f32 %v522, %v773
        %v775 = vpop.f32.mrb[0].mxu0
        %776 = vmatprep.mubr.bf16.mxu0 0
        %777 = vmatmul.mubr.bf16.gmra.mrb[0].mxu0 %v731
        %v778 = vpop.f32.mrb[0].mxu0
        %v779 = vadd.f32 %v527, %v778
        %v780 = vpop.f32.mrb[0].mxu0
        %v781 = vpop.f32.mrb[0].mxu0
        %v782 = vadd.f32 %v532, %v781
        %v783 = vpop.f32.mrb[0].mxu0
        %784 = vdwg.mxu0
        %v789 = vunpack.c.l.b16 %v450
        %v790 = vunpack.c.l.b16 %v451
        %v791 = vunpack.c.l.b16 %v452
        %v792 = vunpack.c.l.b16 %v453
        %v793 = vpack.c.b16 %v790, %v789
        %v794 = vpack.c.b16 %v792, %v791
        %v800 = vunpack.c.l.b16 %v485
        %v801 = vunpack.c.l.b16 %v486
        %v802 = vunpack.c.l.b16 %v487
        %v803 = vunpack.c.l.b16 %v488
        %v804 = vunpack.c.l.b16 %v489
        %v805 = vpack.c.b16 %v801, %v800
        %v806 = vpack.c.b16 %v803, %v802
        %v807 = vpack.c.b16 %v804, %v804
        %v811 = vsel %vm559, %v793, 0
        %v814 = vsel %vm559, %v794, 0
        %v817 = vsel %vm566, %v807, 0
        %819 = vmatprep.subr.bf16.mxu0 0
        %820 = vmatpush1.bf16.msra.mxu0 %v805
        %821 = vmatprep.subr.bf16.mxu0 0
        %822 = vmatpush1.bf16.msra.mxu0 %v806
        %823 = vmatprep.subr.bf16.mxu0 0
        %824 = vmatpush1.bf16.msra.mxu0 %v817
        %825 = vmatprep.subr.bf16.mxu0 0
        %826 = vmatpush1.bf16.msra.mxu0 0
        %827 = vmatprep.subr.bf16.mxu0 0
        %828 = vmatpush1.bf16.msra.mxu0 0
        %829 = vmatprep.subr.bf16.mxu0 0
        %830 = vmatpush1.bf16.msra.mxu0 0
        %831 = vmatprep.subr.bf16.mxu0 0
        %832 = vmatpush1.bf16.msra.mxu0 0
        %833 = vmatprep.subr.bf16.mxu0 0
        %834 = vmatpush1.bf16.msra.mxu0 0
        %835 = vmatprep.subr.bf16.mxu0 0
        %836 = vmatpush1.bf16.msra.mxu0 0
        %837 = vmatprep.subr.bf16.mxu0 0
        %838 = vmatpush1.bf16.msra.mxu0 0
        %839 = vmatprep.subr.bf16.mxu0 0
        %840 = vmatpush1.bf16.msra.mxu0 0
        %841 = vmatprep.subr.bf16.mxu0 0
        %842 = vmatpush1.bf16.msra.mxu0 0
        %843 = vmatprep.subr.bf16.mxu0 0
        %844 = vmatpush1.bf16.msra.mxu0 0
        %845 = vmatprep.subr.bf16.mxu0 0
        %846 = vmatpush1.bf16.msra.mxu0 0
        %847 = vmatprep.subr.bf16.mxu0 0
        %848 = vmatpush1.bf16.msra.mxu0 0
        %849 = vmatprep.subr.bf16.mxu0 0
        %850 = vmatpush1.bf16.msra.mxu0 0
        %851 = vmatprep.mubr.bf16.mxu0 0
        %852 = vmatmul.mubr.bf16.gmra.mrb[0].mxu0 %v811
        %v853 = vpop.f32.mrb[0].mxu0
        %v854 = vadd.f32 %v517, %v853
        %v855 = vpop.f32.mrb[0].mxu0
        %v856 = vpop.f32.mrb[0].mxu0
        %v857 = vadd.f32 %v522, %v856
        %v858 = vpop.f32.mrb[0].mxu0
        %859 = vmatprep.mubr.bf16.mxu0 0
        %860 = vmatmul.mubr.bf16.gmra.mrb[0].mxu0 %v814
        %v861 = vpop.f32.mrb[0].mxu0
        %v862 = vadd.f32 %v527, %v861
        %v863 = vpop.f32.mrb[0].mxu0
        %v864 = vpop.f32.mrb[0].mxu0
        %v865 = vadd.f32 %v532, %v864
        %v866 = vpop.f32.mrb[0].mxu0
        %867 = vdwg.mxu0
        %v872 = vunpack.c.l.b16 %v454
        %v873 = vunpack.c.l.b16 %v455
        %v874 = vunpack.c.l.b16 %v456
        %v875 = vunpack.c.l.b16 %v457
        %v876 = vpack.c.b16 %v873, %v872
        %v877 = vpack.c.b16 %v875, %v874
        %v883 = vunpack.c.l.b16 %v490
        %v884 = vunpack.c.l.b16 %v491
        %v885 = vunpack.c.l.b16 %v492
        %v886 = vunpack.c.l.b16 %v493
        %v887 = vunpack.c.l.b16 %v494
        %v888 = vpack.c.b16 %v884, %v883
        %v889 = vpack.c.b16 %v886, %v885
        %v890 = vpack.c.b16 %v887, %v887
        %v894 = vsel %vm559, %v876, 0
        %v897 = vsel %vm559, %v877, 0
        %v900 = vsel %vm566, %v890, 0
        %902 = vmatprep.subr.bf16.mxu0 0
        %903 = vmatpush1.bf16.msra.mxu0 %v888
        %904 = vmatprep.subr.bf16.mxu0 0
        %905 = vmatpush1.bf16.msra.mxu0 %v889
        %906 = vmatprep.subr.bf16.mxu0 0
        %907 = vmatpush1.bf16.msra.mxu0 %v900
        %908 = vmatprep.subr.bf16.mxu0 0
        %909 = vmatpush1.bf16.msra.mxu0 0
        %910 = vmatprep.subr.bf16.mxu0 0
        %911 = vmatpush1.bf16.msra.mxu0 0
        %912 = vmatprep.subr.bf16.mxu0 0
        %913 = vmatpush1.bf16.msra.mxu0 0
        %914 = vmatprep.subr.bf16.mxu0 0
        %915 = vmatpush1.bf16.msra.mxu0 0
        %916 = vmatprep.subr.bf16.mxu0 0
        %917 = vmatpush1.bf16.msra.mxu0 0
        %918 = vmatprep.subr.bf16.mxu0 0
        %919 = vmatpush1.bf16.msra.mxu0 0
        %920 = vmatprep.subr.bf16.mxu0 0
        %921 = vmatpush1.bf16.msra.mxu0 0
        %922 = vmatprep.subr.bf16.mxu0 0
        %923 = vmatpush1.bf16.msra.mxu0 0
        %924 = vmatprep.subr.bf16.mxu0 0
        %925 = vmatpush1.bf16.msra.mxu0 0
        %926 = vmatprep.subr.bf16.mxu0 0
        %927 = vmatpush1.bf16.msra.mxu0 0
        %928 = vmatprep.subr.bf16.mxu0 0
        %929 = vmatpush1.bf16.msra.mxu0 0
        %930 = vmatprep.subr.bf16.mxu0 0
        %931 = vmatpush1.bf16.msra.mxu0 0
        %932 = vmatprep.subr.bf16.mxu0 0
        %933 = vmatpush1.bf16.msra.mxu0 0
        %934 = vmatprep.mubr.bf16.mxu0 0
        %935 = vmatmul.mubr.bf16.gmra.mrb[0].mxu0 %v894
        %v936 = vpop.f32.mrb[0].mxu0
        %v937 = vadd.f32 %v517, %v936
        %v938 = vpop.f32.mrb[0].mxu0
        %v939 = vpop.f32.mrb[0].mxu0
        %v940 = vadd.f32 %v522, %v939
        %v941 = vpop.f32.mrb[0].mxu0
        %942 = vmatprep.mubr.bf16.mxu0 0
        %943 = vmatmul.mubr.bf16.gmra.mrb[0].mxu0 %v897
        %v944 = vpop.f32.mrb[0].mxu0
        %v945 = vadd.f32 %v527, %v944
        %v946 = vpop.f32.mrb[0].mxu0
        %v947 = vpop.f32.mrb[0].mxu0
        %v948 = vadd.f32 %v532, %v947
        %v949 = vpop.f32.mrb[0].mxu0
        %950 = vdwg.mxu0
        %v955 = vunpack.c.l.b16 %v458
        %v956 = vunpack.c.l.b16 %v459
        %v957 = vunpack.c.l.b16 %v460
        %v958 = vunpack.c.l.b16 %v461
        %v959 = vpack.c.b16 %v956, %v955
        %v960 = vpack.c.b16 %v958, %v957
        %v966 = vunpack.c.l.b16 %v495
        %v967 = vunpack.c.l.b16 %v496
        %v968 = vunpack.c.l.b16 %v497
        %v969 = vunpack.c.l.b16 %v498
        %v970 = vunpack.c.l.b16 %v499
        %v971 = vpack.c.b16 %v967, %v966
        %v972 = vpack.c.b16 %v969, %v968
        %v973 = vpack.c.b16 %v970, %v970
        %v977 = vsel %vm559, %v959, 0
        %v980 = vsel %vm559, %v960, 0
        %v983 = vsel %vm566, %v973, 0
        %985 = vmatprep.subr.bf16.mxu0 0
        %986 = vmatpush1.bf16.msra.mxu0 %v971
        %987 = vmatprep.subr.bf16.mxu0 0
        %988 = vmatpush1.bf16.msra.mxu0 %v972
        %989 = vmatprep.subr.bf16.mxu0 0
        %990 = vmatpush1.bf16.msra.mxu0 %v983
        %991 = vmatprep.subr.bf16.mxu0 0
        %992 = vmatpush1.bf16.msra.mxu0 0
        %993 = vmatprep.subr.bf16.mxu0 0
        %994 = vmatpush1.bf16.msra.mxu0 0
        %995 = vmatprep.subr.bf16.mxu0 0
        %996 = vmatpush1.bf16.msra.mxu0 0
        %997 = vmatprep.subr.bf16.mxu0 0
        %998 = vmatpush1.bf16.msra.mxu0 0
        %999 = vmatprep.subr.bf16.mxu0 0
        %1000 = vmatpush1.bf16.msra.mxu0 0
        %1001 = vmatprep.subr.bf16.mxu0 0
        %1002 = vmatpush1.bf16.msra.mxu0 0
        %1003 = vmatprep.subr.bf16.mxu0 0
        %1004 = vmatpush1.bf16.msra.mxu0 0
        %1005 = vmatprep.subr.bf16.mxu0 0
        %1006 = vmatpush1.bf16.msra.mxu0 0
        %1007 = vmatprep.subr.bf16.mxu0 0
        %1008 = vmatpush1.bf16.msra.mxu0 0
        %1009 = vmatprep.subr.bf16.mxu0 0
        %1010 = vmatpush1.bf16.msra.mxu0 0
        %1011 = vmatprep.subr.bf16.mxu0 0
        %1012 = vmatpush1.bf16.msra.mxu0 0
        %1013 = vmatprep.subr.bf16.mxu0 0
        %1014 = vmatpush1.bf16.msra.mxu0 0
        %1015 = vmatprep.subr.bf16.mxu0 0
        %1016 = vmatpush1.bf16.msra.mxu0 0
        %1017 = vmatprep.mubr.bf16.mxu0 0
        %1018 = vmatmul.mubr.bf16.gmra.mrb[0].mxu0 %v977
        %v1019 = vpop.f32.mrb[0].mxu0
        %v1020 = vadd.f32 %v517, %v1019
        %v1021 = vpop.f32.mrb[0].mxu0
        %v1022 = vpop.f32.mrb[0].mxu0
        %v1023 = vadd.f32 %v522, %v1022
        %v1024 = vpop.f32.mrb[0].mxu0
        %1025 = vmatprep.mubr.bf16.mxu0 0
        %1026 = vmatmul.mubr.bf16.gmra.mrb[0].mxu0 %v980
        %v1027 = vpop.f32.mrb[0].mxu0
        %v1028 = vadd.f32 %v527, %v1027
        %v1029 = vpop.f32.mrb[0].mxu0
        %v1030 = vpop.f32.mrb[0].mxu0
        %v1031 = vadd.f32 %v532, %v1030
        %v1032 = vpop.f32.mrb[0].mxu0
        %1033 = vdwg.mxu0
        %v1038 = vunpack.c.l.b16 %v462
        %v1039 = vunpack.c.l.b16 %v463
        %v1040 = vunpack.c.l.b16 %v464
        %v1041 = vunpack.c.l.b16 %v465
        %v1042 = vpack.c.b16 %v1039, %v1038
        %v1043 = vpack.c.b16 %v1041, %v1040
        %v1049 = vunpack.c.l.b16 %v500
        %v1050 = vunpack.c.l.b16 %v501
        %v1051 = vunpack.c.l.b16 %v502
        %v1052 = vunpack.c.l.b16 %v503
        %v1053 = vunpack.c.l.b16 %v504
        %v1054 = vpack.c.b16 %v1050, %v1049
        %v1055 = vpack.c.b16 %v1052, %v1051
        %v1056 = vpack.c.b16 %v1053, %v1053
        %v1060 = vsel %vm559, %v1042, 0
        %v1063 = vsel %vm559, %v1043, 0
        %v1066 = vsel %vm566, %v1056, 0
        %1068 = vmatprep.subr.bf16.mxu0 0
        %1069 = vmatpush1.bf16.msra.mxu0 %v1054
        %1070 = vmatprep.subr.bf16.mxu0 0
        %1071 = vmatpush1.bf16.msra.mxu0 %v1055
        %1072 = vmatprep.subr.bf16.mxu0 0
        %1073 = vmatpush1.bf16.msra.mxu0 %v1066
        %1074 = vmatprep.subr.bf16.mxu0 0
        %1075 = vmatpush1.bf16.msra.mxu0 0
        %1076 = vmatprep.subr.bf16.mxu0 0
        %1077 = vmatpush1.bf16.msra.mxu0 0
        %1078 = vmatprep.subr.bf16.mxu0 0
        %1079 = vmatpush1.bf16.msra.mxu0 0
        %1080 = vmatprep.subr.bf16.mxu0 0
        %1081 = vmatpush1.bf16.msra.mxu0 0
        %1082 = vmatprep.subr.bf16.mxu0 0
        %1083 = vmatpush1.bf16.msra.mxu0 0
        %1084 = vmatprep.subr.bf16.mxu0 0
        %1085 = vmatpush1.bf16.msra.mxu0 0
        %1086 = vmatprep.subr.bf16.mxu0 0
        %1087 = vmatpush1.bf16.msra.mxu0 0
        %1088 = vmatprep.subr.bf16.mxu0 0
        %1089 = vmatpush1.bf16.msra.mxu0 0
        %1090 = vmatprep.subr.bf16.mxu0 0
        %1091 = vmatpush1.bf16.msra.mxu0 0
        %1092 = vmatprep.subr.bf16.mxu0 0
        %1093 = vmatpush1.bf16.msra.mxu0 0
        %1094 = vmatprep.subr.bf16.mxu0 0
        %1095 = vmatpush1.bf16.msra.mxu0 0
        %1096 = vmatprep.subr.bf16.mxu0 0
        %1097 = vmatpush1.bf16.msra.mxu0 0
        %1098 = vmatprep.subr.bf16.mxu0 0
        %1099 = vmatpush1.bf16.msra.mxu0 0
        %1100 = vmatprep.mubr.bf16.mxu0 0
        %1101 = vmatmul.mubr.bf16.gmra.mrb[0].mxu0 %v1060
        %v1102 = vpop.f32.mrb[0].mxu0
        %v1103 = vadd.f32 %v517, %v1102
        %v1104 = vpop.f32.mrb[0].mxu0
        %v1105 = vpop.f32.mrb[0].mxu0
        %v1106 = vadd.f32 %v522, %v1105
        %v1107 = vpop.f32.mrb[0].mxu0
        %1108 = vmatprep.mubr.bf16.mxu0 0
        %1109 = vmatmul.mubr.bf16.gmra.mrb[0].mxu0 %v1063
        %v1110 = vpop.f32.mrb[0].mxu0
        %v1111 = vadd.f32 %v527, %v1110
        %v1112 = vpop.f32.mrb[0].mxu0
        %v1113 = vpop.f32.mrb[0].mxu0
        %v1114 = vadd.f32 %v532, %v1113
        %v1115 = vpop.f32.mrb[0].mxu0
        %1116 = vdwg.mxu0
        %v1121 = vunpack.c.l.b16 %v466
        %v1122 = vunpack.c.l.b16 %v467
        %v1123 = vunpack.c.l.b16 %v468
        %v1124 = vunpack.c.l.b16 %v469
        %v1125 = vpack.c.b16 %v1122, %v1121
        %v1126 = vpack.c.b16 %v1124, %v1123
        %v1132 = vunpack.c.l.b16 %v505
        %v1133 = vunpack.c.l.b16 %v506
        %v1134 = vunpack.c.l.b16 %v507
        %v1135 = vunpack.c.l.b16 %v508
        %v1136 = vunpack.c.l.b16 %v509
        %v1137 = vpack.c.b16 %v1133, %v1132
        %v1138 = vpack.c.b16 %v1135, %v1134
        %v1139 = vpack.c.b16 %v1136, %v1136
        %v1143 = vsel %vm559, %v1125, 0
        %v1146 = vsel %vm559, %v1126, 0
        %v1149 = vsel %vm566, %v1139, 0
        %1151 = vmatprep.subr.bf16.mxu0 0
        %1152 = vmatpush1.bf16.msra.mxu0 %v1137
        %1153 = vmatprep.subr.bf16.mxu0 0
        %1154 = vmatpush1.bf16.msra.mxu0 %v1138
        %1155 = vmatprep.subr.bf16.mxu0 0
        %1156 = vmatpush1.bf16.msra.mxu0 %v1149
        %1157 = vmatprep.subr.bf16.mxu0 0
        %1158 = vmatpush1.bf16.msra.mxu0 0
        %1159 = vmatprep.subr.bf16.mxu0 0
        %1160 = vmatpush1.bf16.msra.mxu0 0
        %1161 = vmatprep.subr.bf16.mxu0 0
        %1162 = vmatpush1.bf16.msra.mxu0 0
        %1163 = vmatprep.subr.bf16.mxu0 0
        %1164 = vmatpush1.bf16.msra.mxu0 0
        %1165 = vmatprep.subr.bf16.mxu0 0
        %1166 = vmatpush1.bf16.msra.mxu0 0
        %1167 = vmatprep.subr.bf16.mxu0 0
        %1168 = vmatpush1.bf16.msra.mxu0 0
        %1169 = vmatprep.subr.bf16.mxu0 0
        %1170 = vmatpush1.bf16.msra.mxu0 0
        %1171 = vmatprep.subr.bf16.mxu0 0
        %1172 = vmatpush1.bf16.msra.mxu0 0
        %1173 = vmatprep.subr.bf16.mxu0 0
        %1174 = vmatpush1.bf16.msra.mxu0 0
        %1175 = vmatprep.subr.bf16.mxu0 0
        %1176 = vmatpush1.bf16.msra.mxu0 0
        %1177 = vmatprep.subr.bf16.mxu0 0
        %1178 = vmatpush1.bf16.msra.mxu0 0
        %1179 = vmatprep.subr.bf16.mxu0 0
        %1180 = vmatpush1.bf16.msra.mxu0 0
        %1181 = vmatprep.subr.bf16.mxu0 0
        %1182 = vmatpush1.bf16.msra.mxu0 0
        %1183 = vmatprep.mubr.bf16.mxu0 0
        %1184 = vmatmul.mubr.bf16.gmra.mrb[0].mxu0 %v1143
        %v1185 = vpop.f32.mrb[0].mxu0
        %v1186 = vadd.f32 %v517, %v1185
        %v1187 = vpop.f32.mrb[0].mxu0
        %v1188 = vpop.f32.mrb[0].mxu0
        %v1189 = vadd.f32 %v522, %v1188
        %v1190 = vpop.f32.mrb[0].mxu0
        %1191 = vmatprep.mubr.bf16.mxu0 0
        %1192 = vmatmul.mubr.bf16.gmra.mrb[0].mxu0 %v1146
        %v1193 = vpop.f32.mrb[0].mxu0
        %v1194 = vadd.f32 %v527, %v1193
        %v1195 = vpop.f32.mrb[0].mxu0
        %v1196 = vpop.f32.mrb[0].mxu0
        %v1197 = vadd.f32 %v532, %v1196
        %v1198 = vpop.f32.mrb[0].mxu0
        %1199 = vdwg.mxu0
        %v1200 = vmax.f32 %v605, 0.0
        %v1201 = vmax.f32 %v608, 0.0
        %v1202 = vmax.f32 %v613, 0.0
        %v1203 = vmax.f32 %v616, 0.0
        %v1204 = vmax.f32 %v688, 0.0
        %v1205 = vmax.f32 %v691, 0.0
        %v1206 = vmax.f32 %v696, 0.0
        %v1207 = vmax.f32 %v699, 0.0
        %v1208 = vmax.f32 %v771, 0.0
        %v1209 = vmax.f32 %v774, 0.0
        %v1210 = vmax.f32 %v779, 0.0
        %v1211 = vmax.f32 %v782, 0.0
        %v1212 = vmax.f32 %v854, 0.0
        %v1213 = vmax.f32 %v857, 0.0
        %v1214 = vmax.f32 %v862, 0.0
        %v1215 = vmax.f32 %v865, 0.0
        %v1216 = vmax.f32 %v937, 0.0
        %v1217 = vmax.f32 %v940, 0.0
        %v1218 = vmax.f32 %v945, 0.0
        %v1219 = vmax.f32 %v948, 0.0
        %v1220 = vmax.f32 %v1020, 0.0
        %v1221 = vmax.f32 %v1023, 0.0
        %v1222 = vmax.f32 %v1028, 0.0
        %v1223 = vmax.f32 %v1031, 0.0
        %v1224 = vmax.f32 %v1103, 0.0
        %v1225 = vmax.f32 %v1106, 0.0
        %v1226 = vmax.f32 %v1111, 0.0
        %v1227 = vmax.f32 %v1114, 0.0
        %v1228 = vmax.f32 %v1186, 0.0
        %v1229 = vmax.f32 %v1189, 0.0
        %v1230 = vmax.f32 %v1194, 0.0
        %v1231 = vmax.f32 %v1197, 0.0
        %v1232 = vld [vmem:[#allocation2] sm:$0xff]
        %1233 = vadd.xlane.f32.xlu0 %v1200
        %v1234 = vpop.xlane.xlu0 %1233
        %1235 = vadd.xlane.f32.xlu0 %v1201
        %v1236 = vpop.xlane.xlu0 %1235
        %1237 = vadd.xlane.f32.xlu0 %v1202
        %v1238 = vpop.xlane.xlu0 %1237
        %1239 = vadd.xlane.f32.xlu0 %v1203
        %v1240 = vpop.xlane.xlu0 %1239
        %1241 = vadd.xlane.f32.xlu0 %v1204
        %v1242 = vpop.xlane.xlu0 %1241
        %1243 = vadd.xlane.f32.xlu0 %v1205
        %v1244 = vpop.xlane.xlu0 %1243
        %1245 = vadd.xlane.f32.xlu0 %v1206
        %v1246 = vpop.xlane.xlu0 %1245
        %1247 = vadd.xlane.f32.xlu0 %v1207
        %v1248 = vpop.xlane.xlu0 %1247
        %1249 = vadd.xlane.f32.xlu0 %v1208
        %v1250 = vpop.xlane.xlu0 %1249
        %1251 = vadd.xlane.f32.xlu0 %v1209
        %v1252 = vpop.xlane.xlu0 %1251
        %1253 = vadd.xlane.f32.xlu0 %v1210
        %v1254 = vpop.xlane.xlu0 %1253
        %1255 = vadd.xlane.f32.xlu0 %v1211
        %v1256 = vpop.xlane.xlu0 %1255
        %1257 = vadd.xlane.f32.xlu0 %v1212
        %v1258 = vpop.xlane.xlu0 %1257
        %1259 = vadd.xlane.f32.xlu0 %v1213
        %v1260 = vpop.xlane.xlu0 %1259
        %1261 = vadd.xlane.f32.xlu0 %v1214
        %v1262 = vpop.xlane.xlu0 %1261
        %1263 = vadd.xlane.f32.xlu0 %v1215
        %v1264 = vpop.xlane.xlu0 %1263
        %1265 = vadd.xlane.f32.xlu0 %v1216
        %v1266 = vpop.xlane.xlu0 %1265
        %1267 = vadd.xlane.f32.xlu0 %v1217
        %v1268 = vpop.xlane.xlu0 %1267
        %1269 = vadd.xlane.f32.xlu0 %v1218
        %v1270 = vpop.xlane.xlu0 %1269
        %1271 = vadd.xlane.f32.xlu0 %v1219
        %v1272 = vpop.xlane.xlu0 %1271
        %1273 = vadd.xlane.f32.xlu0 %v1220
        %v1274 = vpop.xlane.xlu0 %1273
        %1275 = vadd.xlane.f32.xlu0 %v1221
        %v1276 = vpop.xlane.xlu0 %1275
        %1277 = vadd.xlane.f32.xlu0 %v1222
        %v1278 = vpop.xlane.xlu0 %1277
        %1279 = vadd.xlane.f32.xlu0 %v1223
        %v1280 = vpop.xlane.xlu0 %1279
        %1281 = vadd.xlane.f32.xlu0 %v1224
        %v1282 = vpop.xlane.xlu0 %1281
        %1283 = vadd.xlane.f32.xlu0 %v1225
        %v1284 = vpop.xlane.xlu0 %1283
        %1285 = vadd.xlane.f32.xlu0 %v1226
        %v1286 = vpop.xlane.xlu0 %1285
        %1287 = vadd.xlane.f32.xlu0 %v1227
        %v1288 = vpop.xlane.xlu0 %1287
        %1289 = vadd.xlane.f32.xlu0 %v1228
        %v1290 = vpop.xlane.xlu0 %1289
        %1291 = vadd.xlane.f32.xlu0 %v1229
        %v1292 = vpop.xlane.xlu0 %1291
        %1293 = vadd.xlane.f32.xlu0 %v1230
        %v1294 = vpop.xlane.xlu0 %1293
        %1295 = vadd.xlane.f32.xlu0 %v1231
        %v1296 = vpop.xlane.xlu0 %1295
        %v1329 = vlaneseq
        %v1330 = vand.u32 %v1329, 127
        %v1331 = vlaneseq
        %v1332 = vshrl.u32 %v1331, 7
        %v1333 = vsub.s32 %v1330, %v1332
        %v1334 = vrot.slane %v1234, %v1333
        %v1335 = vadd.s32 %v1330, 4294967288
        %v1336 = vlaneseq
        %v1337 = vshrl.u32 %v1336, 7
        %v1338 = vsub.s32 %v1335, %v1337
        %v1339 = vrot.slane %v1236, %v1338
        %vm1340 = vcmask 130112
        %v1341 = vsel %vm1340, %v1339, %v1334
        %v1342 = vadd.s32 %v1330, 4294967280
        %v1343 = vlaneseq
        %v1344 = vshrl.u32 %v1343, 7
        %v1345 = vsub.s32 %v1342, %v1344
        %v1346 = vrot.slane %v1238, %v1345
        %vm1347 = vcmask 195712
        %v1348 = vsel %vm1347, %v1346, %v1341
        %v1349 = vadd.s32 %v1330, 4294967272
        %v1350 = vlaneseq
        %v1351 = vshrl.u32 %v1350, 7
        %v1352 = vsub.s32 %v1349, %v1351
        %v1353 = vrot.slane %v1240, %v1352
        %vm1354 = vcmask 261312
        %v1355 = vsel %vm1354, %v1353, %v1348
        %v1356 = vlaneseq
        %v1357 = vshrl.u32 %v1356, 7
        %v1358 = vsub.s32 %v1330, %v1357
        %v1359 = vrot.slane %v1242, %v1358
        %v1360 = vlaneseq
        %v1361 = vshrl.u32 %v1360, 7
        %v1362 = vsub.s32 %v1335, %v1361
        %v1363 = vrot.slane %v1244, %v1362
        %v1364 = vsel %vm1340, %v1363, %v1359
        %v1365 = vlaneseq
        %v1366 = vshrl.u32 %v1365, 7
        %v1367 = vsub.s32 %v1342, %v1366
        %v1368 = vrot.slane %v1246, %v1367
        %v1369 = vsel %vm1347, %v1368, %v1364
        %v1370 = vlaneseq
        %v1371 = vshrl.u32 %v1370, 7
        %v1372 = vsub.s32 %v1349, %v1371
        %v1373 = vrot.slane %v1248, %v1372
        %v1374 = vsel %vm1354, %v1373, %v1369
        %v1375 = vlaneseq
        %v1376 = vshrl.u32 %v1375, 7
        %v1377 = vsub.s32 %v1330, %v1376
        %v1378 = vrot.slane %v1250, %v1377
        %v1379 = vlaneseq
        %v1380 = vshrl.u32 %v1379, 7
        %v1381 = vsub.s32 %v1335, %v1380
        %v1382 = vrot.slane %v1252, %v1381
        %v1383 = vsel %vm1340, %v1382, %v1378
        %v1384 = vlaneseq
        %v1385 = vshrl.u32 %v1384, 7
        %v1386 = vsub.s32 %v1342, %v1385
        %v1387 = vrot.slane %v1254, %v1386
        %v1388 = vsel %vm1347, %v1387, %v1383
        %v1389 = vlaneseq
        %v1390 = vshrl.u32 %v1389, 7
        %v1391 = vsub.s32 %v1349, %v1390
        %v1392 = vrot.slane %v1256, %v1391
        %v1393 = vsel %vm1354, %v1392, %v1388
        %v1394 = vlaneseq
        %v1395 = vshrl.u32 %v1394, 7
        %v1396 = vsub.s32 %v1330, %v1395
        %v1397 = vrot.slane %v1258, %v1396
        %v1398 = vlaneseq
        %v1399 = vshrl.u32 %v1398, 7
        %v1400 = vsub.s32 %v1335, %v1399
        %v1401 = vrot.slane %v1260, %v1400
        %v1402 = vsel %vm1340, %v1401, %v1397
        %v1403 = vlaneseq
        %v1404 = vshrl.u32 %v1403, 7
        %v1405 = vsub.s32 %v1342, %v1404
        %v1406 = vrot.slane %v1262, %v1405
        %v1407 = vsel %vm1347, %v1406, %v1402
        %v1408 = vlaneseq
        %v1409 = vshrl.u32 %v1408, 7
        %v1410 = vsub.s32 %v1349, %v1409
        %v1411 = vrot.slane %v1264, %v1410
        %v1412 = vsel %vm1354, %v1411, %v1407
        %v1413 = vlaneseq
        %v1414 = vshrl.u32 %v1413, 7
        %v1415 = vsub.s32 %v1330, %v1414
        %v1416 = vrot.slane %v1266, %v1415
        %v1417 = vlaneseq
        %v1418 = vshrl.u32 %v1417, 7
        %v1419 = vsub.s32 %v1335, %v1418
        %v1420 = vrot.slane %v1268, %v1419
        %v1421 = vsel %vm1340, %v1420, %v1416
        %v1422 = vlaneseq
        %v1423 = vshrl.u32 %v1422, 7
        %v1424 = vsub.s32 %v1342, %v1423
        %v1425 = vrot.slane %v1270, %v1424
        %v1426 = vsel %vm1347, %v1425, %v1421
        %v1427 = vlaneseq
        %v1428 = vshrl.u32 %v1427, 7
        %v1429 = vsub.s32 %v1349, %v1428
        %v1430 = vrot.slane %v1272, %v1429
        %v1431 = vsel %vm1354, %v1430, %v1426
        %v1432 = vlaneseq
        %v1433 = vshrl.u32 %v1432, 7
        %v1434 = vsub.s32 %v1330, %v1433
        %v1435 = vrot.slane %v1274, %v1434
        %v1436 = vlaneseq
        %v1437 = vshrl.u32 %v1436, 7
        %v1438 = vsub.s32 %v1335, %v1437
        %v1439 = vrot.slane %v1276, %v1438
        %v1440 = vsel %vm1340, %v1439, %v1435
        %v1441 = vlaneseq
        %v1442 = vshrl.u32 %v1441, 7
        %v1443 = vsub.s32 %v1342, %v1442
        %v1444 = vrot.slane %v1278, %v1443
        %v1445 = vsel %vm1347, %v1444, %v1440
        %v1446 = vlaneseq
        %v1447 = vshrl.u32 %v1446, 7
        %v1448 = vsub.s32 %v1349, %v1447
        %v1449 = vrot.slane %v1280, %v1448
        %v1450 = vsel %vm1354, %v1449, %v1445
        %v1451 = vlaneseq
        %v1452 = vshrl.u32 %v1451, 7
        %v1453 = vsub.s32 %v1330, %v1452
        %v1454 = vrot.slane %v1282, %v1453
        %v1455 = vlaneseq
        %v1456 = vshrl.u32 %v1455, 7
        %v1457 = vsub.s32 %v1335, %v1456
        %v1458 = vrot.slane %v1284, %v1457
        %v1459 = vsel %vm1340, %v1458, %v1454
        %v1460 = vlaneseq
        %v1461 = vshrl.u32 %v1460, 7
        %v1462 = vsub.s32 %v1342, %v1461
        %v1463 = vrot.slane %v1286, %v1462
        %v1464 = vsel %vm1347, %v1463, %v1459
        %v1465 = vlaneseq
        %v1466 = vshrl.u32 %v1465, 7
        %v1467 = vsub.s32 %v1349, %v1466
        %v1468 = vrot.slane %v1288, %v1467
        %v1469 = vsel %vm1354, %v1468, %v1464
        %v1470 = vlaneseq
        %v1471 = vshrl.u32 %v1470, 7
        %v1472 = vsub.s32 %v1330, %v1471
        %v1473 = vrot.slane %v1290, %v1472
        %v1474 = vlaneseq
        %v1475 = vshrl.u32 %v1474, 7
        %v1476 = vsub.s32 %v1335, %v1475
        %v1477 = vrot.slane %v1292, %v1476
        %v1478 = vsel %vm1340, %v1477, %v1473
        %v1479 = vlaneseq
        %v1480 = vshrl.u32 %v1479, 7
        %v1481 = vsub.s32 %v1342, %v1480
        %v1482 = vrot.slane %v1294, %v1481
        %v1483 = vsel %vm1347, %v1482, %v1478
        %v1484 = vlaneseq
        %v1485 = vshrl.u32 %v1484, 7
        %v1486 = vsub.s32 %v1349, %v1485
        %v1487 = vrot.slane %v1296, %v1486
        %v1488 = vsel %vm1354, %v1487, %v1483
        %vm1489 = vcmask 1041409
        %v1490 = vsel %vm1489, %v1374, %v1355
        %vm1491 = vcmask 1042434
        %v1492 = vsel %vm1491, %v1393, %v1490
        %vm1493 = vcmask 1043459
        %v1494 = vsel %vm1493, %v1412, %v1492
        %vm1495 = vcmask 1044484
        %v1496 = vsel %vm1495, %v1431, %v1494
        %vm1497 = vcmask 1045509
        %v1498 = vsel %vm1497, %v1450, %v1496
        %vm1499 = vcmask 1046534
        %v1500 = vsel %vm1499, %v1469, %v1498
        %vm1501 = vcmask 1047559
        %v1502 = vsel %vm1501, %v1488, %v1500
        %v1504 = vadd.f32 %v1232, %v1502
        %vm1505 = vcmask 261120
        %1506 = vst.msk [vmem:[#allocation2] sm:$0xff] %vm1505, %v1504
        %p1507 = scmp.eq.s32.totalorder %s22, 1
        // Predicated region
        $region86: #{tpu_custom_call.1} parent=76 // pred_check
          %p1508 = pneg %p1507
        $region87: #{tpu_custom_call.1} parent=76 // pred_check_branch
          %1510 = sbr.rel (%p1508) target = $region89
        $region88: #{tpu_custom_call.1} parent=76 // pred_region
          %v1511 = vld [vmem:[#allocation2] sm:$0xff]
          %v1512 = vld [vmem:[%s3] sm:$0xff]
          %v1513 = vld [vmem:[%s3 + $0x8] sm:$0xff]
          %v1514 = vld [vmem:[%s3 + $0x10] sm:$0xff]
          %v1515 = vld [vmem:[%s3 + $0x18] sm:$0xff]
          %v1516 = vld [vmem:[%s4] sm:$0x1]
          %v1518 = vlaneseq
          %v1519 = vshrl.u32 %v1518, 7
          %v1520 = vsub.s32 0, %v1519
          %v1521 = vrot.slane %v1516, %v1520
          %v1524 = vsel %vm1505, %v1511, 0
          %1526 = vmatprep.subr.mxu0 0.0
          %1527 = vmatpush1.msra.mxu0 %v1512
          %1528 = vmatprep.subr.mxu0 0.0
          %1529 = vmatpush1.msra.mxu0 %v1513
          %1530 = vmatprep.subr.mxu0 0.0
          %1531 = vmatpush1.msra.mxu0 %v1514
          %1532 = vmatprep.subr.mxu0 0.0
          %1533 = vmatpush1.msra.mxu0 %v1515
          %1534 = vmatprep.subr.mxu0 0.0
          %1535 = vmatpush1.msra.mxu0 0.0
          %1536 = vmatprep.subr.mxu0 0.0
          %1537 = vmatpush1.msra.mxu0 0.0
          %1538 = vmatprep.subr.mxu0 0.0
          %1539 = vmatpush1.msra.mxu0 0.0
          %1540 = vmatprep.subr.mxu0 0.0
          %1541 = vmatpush1.msra.mxu0 0.0
          %1542 = vmatprep.subr.mxu0 0.0
          %1543 = vmatpush1.msra.mxu0 0.0
          %1544 = vmatprep.subr.mxu0 0.0
          %1545 = vmatpush1.msra.mxu0 0.0
          %1546 = vmatprep.subr.mxu0 0.0
          %1547 = vmatpush1.msra.mxu0 0.0
          %1548 = vmatprep.subr.mxu0 0.0
          %1549 = vmatpush1.msra.mxu0 0.0
          %1550 = vmatprep.subr.mxu0 0.0
          %1551 = vmatpush1.msra.mxu0 0.0
          %1552 = vmatprep.subr.mxu0 0.0
          %1553 = vmatpush1.msra.mxu0 0.0
          %1554 = vmatprep.subr.mxu0 0.0
          %1555 = vmatpush1.msra.mxu0 0.0
          %1556 = vmatprep.subr.mxu0 0.0
          %1557 = vmatpush1.msra.mxu0 0.0
          %1558 = vmatprep.subr.mxu0 0.0
          %1559 = vmatpush1.msra.mxu0 0.0
          %1560 = vmatprep.subr.mxu0 0.0
          %1561 = vmatpush1.msra.mxu0 0.0
          %1562 = vmatprep.subr.mxu0 0.0
          %1563 = vmatpush1.msra.mxu0 0.0
          %1564 = vmatprep.subr.mxu0 0.0
          %1565 = vmatpush1.msra.mxu0 0.0
          %1566 = vmatprep.subr.mxu0 0.0
          %1567 = vmatpush1.msra.mxu0 0.0
          %1568 = vmatprep.subr.mxu0 0.0
          %1569 = vmatpush1.msra.mxu0 0.0
          %1570 = vmatprep.subr.mxu0 0.0
          %1571 = vmatpush1.msra.mxu0 0.0
          %1572 = vmatprep.subr.mxu0 0.0
          %1573 = vmatpush1.msra.mxu0 0.0
          %1574 = vmatprep.subr.mxu0 0.0
          %1575 = vmatpush1.msra.mxu0 0.0
          %1576 = vmatprep.subr.mxu0 0.0
          %1577 = vmatpush1.msra.mxu0 0.0
          %1578 = vmatprep.subr.mxu0 0.0
          %1579 = vmatpush1.msra.mxu0 0.0
          %1580 = vmatprep.subr.mxu0 0.0
          %1581 = vmatpush1.msra.mxu0 0.0
          %1582 = vmatprep.subr.mxu0 0.0
          %1583 = vmatpush1.msra.mxu0 0.0
          %1584 = vmatprep.subr.mxu0 0.0
          %1585 = vmatpush1.msra.mxu0 0.0
          %1586 = vmatprep.subr.mxu0 0.0
          %1587 = vmatpush1.msra.mxu0 0.0
          %1588 = vmatprep.subr.mxu0 0.0
          %1589 = vmatpush1.msra.mxu0 0.0
          %1590 = vmatprep.mubr.f32.mxu0 0.0
          %1591 = vmatmul.mubr.f32.gmra.mrb[0].mxu0 %v1524
          %v1592 = vpop.f32.mrb[0].mxu0
          %v1593 = vadd.f32 %v1521, %v1592
          %v1594 = vpop.f32.mrb[0].mxu0
          %1595 = vdwg.mxu0
          %1596 = vst [vmem:[#allocation4] sm:$0xff] %v1593
        $region89: #{tpu_custom_call.1} parent=76 // pred_fallthru
          _
        // Predicated region
        $region90: #{tpu_custom_call.1} parent=76 // pred_check
          %p1597 = pneg %p159
        $region91: #{tpu_custom_call.1} parent=76 // pred_check_branch
          %1599 = sbr.rel (%p1597) target = $region93
        $region92: #{tpu_custom_call.1} parent=76 // pred_region
          %s1601 = ssub.s32 128, 128
          %1602 = vsyncadd [#allocation5], %s1601
          %s1603 = smul.addr %s21, 128
          %s1604 = scalar_lea.hbm %s5, %s1603
          %s1606 = sshll.u32 [#allocation4], 4
          %s1607 = int_to_ptr.vmem [resolvable:$true] %s1606
          %1609 = dma.vmem_to_hbm [thread:$0]  %s1607, 128, %s1604, [#allocation5]
        $region93: #{tpu_custom_call.1} parent=76 // pred_fallthru
          _
        // Predicated region
        $region94: #{tpu_custom_call.1} parent=76 // pred_check
          %p1610 = pneg %p159
        $region95: #{tpu_custom_call.1} parent=76 // pred_check_branch
          %1612 = sbr.rel (%p1610) target = $region97
        $region96: #{tpu_custom_call.1} parent=76 // pred_region
          %1613 = dma.done [#allocation5], 128
        $region97: #{tpu_custom_call.1} parent=76 // pred_fallthru
          _
      $region77: #{tpu_custom_call.1} parent=5 // pred_fallthru
        _
      %p1614 = scmp.le.s32.totalorder 2, %s12
      // Predicated region
      $region98: #{tpu_custom_call.1} parent=5 // pred_check
        %p1615 = pneg %p1614
      $region99: #{tpu_custom_call.1} parent=5 // pred_check_branch
        %1617 = sbr.rel (%p1615) target = $region101
      $region100: #{tpu_custom_call.1} parent=5 // pred_region
        %s1618 = ssub.s32 %s12, 2
      $region101: #{tpu_custom_call.1} parent=5 // pred_fallthru
        _
    $region6: #{tpu_custom_call.1} parent=1 // loop_footer
      %s16 = sadd.s32 1, %s12
    $region7: #{tpu_custom_call.1} parent=1 // loop_footer_branch
      %11 = sbr.rel target = $region3
    $region8: #{tpu_custom_call.1} parent=1 // loop_exit
      _
    %1619 = vsyncpa [#allocation5], 1
    %s1620 = scalar_lea.sflag [#allocation5], 1
    %1621 = vsyncpa %s1620, 1

</llo_original>
